<compile_context>
chip_gen: v7x
topology: tpu7x:2x2x1
jax: 0.10.0
libtpu: 0.0.40
codegen_flags: <defaults>
</compile_context>

<pallas_src>
import functools

import jax
import jax.numpy as jnp
from jax.experimental import pallas as pl
from jax.experimental.pallas import tpu as pltpu


# --------------------------- chip-aware knobs --------------------------------

def _device_kind():
    try:
        return jax.devices()[0].device_kind.lower()
    except Exception:
        return ""


def _chip_gen():
    kind = _device_kind()
    if "v7" in kind or "7x" in kind:
        return 7
    if "v6" in kind:
        return 6
    if "v5" in kind:
        return 5
    return 0


def _physical_vmem_bytes():
    try:
        info = pltpu.get_tpu_info()
        for attr in ("vmem_capacity_bytes", "vmem_size_bytes", "vmem_bytes"):
            v = getattr(info, attr, None)
            if v:
                return int(v)
    except Exception:
        pass
    gen = _chip_gen()
    if gen == 7:
        return 64 * 2 ** 20      # v7x: 64 MiB per TensorCore
    if gen in (5, 6):
        return 128 * 2 ** 20     # v5e / v6e: 128 MiB
    return 64 * 2 ** 20          # unknown: conservative


def _default_depthwise_bf16():
    return _chip_gen() in (6, 7)         # v5e has no bf16 VPU


def _mxu_min_contraction():
    return 128 if _chip_gen() in (6, 7) else 64


# ----------------------------- Pallas kernel --------------------------------

def _inverted_block_kernel(xph_ref, xc_ref, xnh_ref,
                           w1_ref, b1_ref, wd_ref, bd_ref, w2_ref, b2_ref,
                           o_ref, *, ksize, th, W, halo,
                           dw_bf16, expand_on_mxu, project_on_mxu):
    # xph_ref : (1, Cin, A)    last A lanes of row tile r-1 (clamped at top)
    # xc_ref  : (1, Cin, L)    current row tile (L = th*W)
    # xnh_ref : (1, Cin, A)    first A lanes of row tile r+1 (clamped at bottom)
    # w1_ref  : (Cmid, Cin)    1x1 expand weights (BN scale folded in)
    # wd_ref  : (Cmid, k*k)    depthwise taps     (BN scale folded in)
    # w2_ref  : (Cout, Cmid)   1x1 project weights(BN scale folded in)
    # b*_ref  : (C, 1)         BN biases
    # o_ref   : (1, Cout, L)   lane-dense output tile
    Cin = xc_ref.shape[1]
    Cmid = w1_ref.shape[0]
    p = ksize // 2
    L = th * W
    A = halo
    Lw = L + 2 * A               # [prev-halo | centre | next-halo] window lanes

    r = pl.program_id(1)
    R = pl.num_programs(1)

    # --- assemble the x window: channels on sublanes, rows*W on lanes -------
    # (concatenating the *raw* pieces is cheap now: Cin is tiny and the halo
    #  is only 2A lanes; concatenating after the expand would copy Cmid rows.)
    xwin = jnp.concatenate([xph_ref[0], xc_ref[0], xnh_ref[0]], axis=1)  # (Cin, Lw)

    # --- 1x1 expand (+ folded BN scale) + bias + ReLU6 -----------------------
    w1 = w1_ref[...]
    if expand_on_mxu:
        h = jnp.dot(w1, xwin, preferred_element_type=jnp.float32)
    else:
        # Tiny contraction: Cin broadcast-FMAs on the VPU instead of a
        # massively under-utilized MXU pass (keeps the vex slots for rolls).
        h = w1[:, 0:1] * xwin[0:1, :]
        for c in range(1, Cin):
            h = h + w1[:, c:c + 1] * xwin[c:c + 1, :]
    h = jnp.clip(h + b1_ref[...], 0.0, 6.0)                              # (Cmid, Lw)

    # --- zero the halo lanes that fall outside the image ---------------------
    # ('same' padding of the depthwise conv is zero in the post-activation
    #  domain).  After the halo shrink this select touches only ~Lw ≈ 1.1*L
    #  lanes, and interior halo lanes keep the neighbour-tile activations.
    lane = jax.lax.broadcasted_iota(jnp.int32, (1, Lw), 1)
    keep = (((lane >= A) & (lane < A + L))
            | ((lane < A) & (r > 0))
            | ((lane >= A + L) & (r < R - 1)))
    h = jnp.where(keep, h, 0.0)

    # --- kxk depthwise conv: lane rolls (XLU) + in-kernel masks + VPU FMAs ---
    wd = wd_ref[...]                                                     # (Cmid, k*k)
    if dw_bf16:
        # bf16 vregs hold [16,128]: halves the roll traffic through the XLU
        # and gives native bf16 VPU taps on v6e/v7x.  Accumulate in f32.
        h = h.astype(jnp.bfloat16)
        wd = wd.astype(jnp.bfloat16)

    col = jax.lax.broadcasted_iota(jnp.int32, (1, L), 1) % W
    wmask = {}
    for dw in range(ksize):
        if dw != p:                                   # W-edge zero padding masks
            off = dw - p
            wmask[dw] = (col + off >= 0) & (col + off < W)

    # Roll-wrap safety: A >= p*W, so any tap whose source index wraps around
    # the window corresponds to a column that is zeroed by wmask anyway.
    acc = jnp.zeros((Cmid, L), jnp.float32)
    for dh in range(ksize):
        for dw in range(ksize):
            shift = (-((dh - p) * W + (dw - p))) % Lw
            src = pltpu.roll(h, shift, axis=1) if shift else h
            t = dh * ksize + dw
            term = src[:, A:A + L] * wd[:, t:t + 1]
            if dw != p:
                term = jnp.where(wmask[dw], term, jnp.zeros_like(term))
            acc = acc + term.astype(jnp.float32)
    d = jnp.clip(acc + bd_ref[...], 0.0, 6.0)                            # (Cmid, L)

    # --- 1x1 project (+ folded BN scale) + bias; lane-dense store ------------
    w2 = w2_ref[...]
    if project_on_mxu:
        y = jnp.dot(w2, d, preferred_element_type=jnp.float32)
    else:
        # Tiny (Cmid x Cout) matmul: keep it off the MXU so it does not share
        # the vex slots with the rolls.
        y = w2[:, 0:1] * d[0:1, :]
        for c in range(1, Cmid):
            y = y + w2[:, c:c + 1] * d[c:c + 1, :]
    o_ref[0] = y + b2_ref[...]                                           # (Cout, L)


# ------------------------------- wrapper -------------------------------------

def _vmem_estimate_bytes(th, W, A, Cin, Cmid, Cout, dw_bf16):
    L = th * W
    Lw = L + 2 * A
    pad8 = lambda c: ((c + 7) // 8) * 8
    dwb = 2 if dw_bf16 else 4
    in_bufs = 2 * pad8(Cin) * Lw * 4                 # double-buffered centre + halos
    out_bufs = 2 * pad8(Cout) * L * 4
    interm = (pad8(Cin) * Lw * 4                     # xwin
              + pad8(Cmid) * Lw * (4 + 2 * dwb)      # h (f32) + bf16 copy + rolled tmp
              + 2 * pad8(Cmid) * L * 4               # acc + term
              + pad8(Cout) * L * 4)                  # y
    return in_bufs + out_bufs + interm + (2 << 20)   # weights / slack


def _pick_row_tile(H, W, A, Cin, Cmid, Cout, N, budget, dw_bf16):
    """Largest row tile th with H % th == 0, (th*W) % A == 0, under the VMEM budget."""
    cands = [t for t in range(1, H + 1) if H % t == 0 and (t * W) % A == 0]
    if not cands:
        # TODO(synk): support arbitrary H via a cdiv grid + in-kernel row
        # masking (or spatial padding) instead of silently dropping the
        # lane-dense guarantee / blowing VMEM with a whole-image tile.
        raise ValueError(
            f"No row tile th divides H={H} with (th*W) % {A} == 0; pad H or W.")
    fits = [t for t in cands
            if _vmem_estimate_bytes(t, W, A, Cin, Cmid, Cout, dw_bf16) <= budget]
    if not fits:
        fits = [min(cands)]          # smallest tile: may spill, but still runs
    th = max(fits)
    if N * (H // th) < 2:            # keep >=2 grid points so v7x's 2 TCs get work
        alt = [t for t in fits if N * (H // t) >= 2]
        if alt:
            th = max(alt)
    return th


def inverted_block(x_nchw, params, *, ksize=3, depthwise_bf16=None, row_tile=None):
    """InvertedBlock forward. x: (N, Cin, H, W) f32 -> (N, Cout, H, W) f32."""
    w1, b1, wd, bd, w2, b2 = params
    N, Cin, H, W = x_nchw.shape
    Cmid = w1.shape[0]
    Cout = w2.shape[0]
    p = ksize // 2

    if depthwise_bf16 is None:
        depthwise_bf16 = _default_depthwise_bf16()

    # 128-aligned halo width (lanes), covering the p rows of depthwise support.
    A = 128 * max(1, -(-(p * W) // 128))

    phys_vmem = _physical_vmem_bytes()
    budget = min((phys_vmem * 3) // 4, 112 * 2 ** 20)

    if row_tile is None:
        th = _pick_row_tile(H, W, A, Cin, Cmid, Cout, N, budget, depthwise_bf16)
    else:
        th = row_tile
    L = th * W
    S = H * W
    R = H // th
    # Roll-wrap / halo-addressing invariants (see kernel comment).
    assert H % th == 0 and L % A == 0 and A >= p * W, (th, W, A, p)

    mxu_thr = _mxu_min_contraction()

    x_flat = x_nchw.reshape(N, Cin, S)   # free row-major reshape; NCHW kept

    kernel = functools.partial(
        _inverted_block_kernel, ksize=ksize, th=th, W=W, halo=A,
        dw_bf16=depthwise_bf16,
        expand_on_mxu=Cin > mxu_thr, project_on_mxu=Cmid > mxu_thr)

    full = lambda shape: pl.BlockSpec(shape, lambda n, r: (0,) * len(shape))
    LA = L // A                 # halo blocks per row tile
    nblk = S // A               # halo blocks per image

    out = pl.pallas_call(
        kernel,
        out_shape=jax.ShapeDtypeStruct((N, Cout, S), jnp.float32),
        grid_spec=pltpu.PrefetchScalarGridSpec(
            num_scalar_prefetch=0,
            grid=(N, R),
            in_specs=[
                # tail (last A lanes) of row tile r-1, clamped at the top edge
                pl.BlockSpec((1, Cin, A),
                             lambda n, r: (n, 0, jnp.maximum(r * LA - 1, 0))),
                # current row tile
                pl.BlockSpec((1, Cin, L), lambda n, r: (n, 0, r)),
                # head (first A lanes) of row tile r+1, clamped at the bottom edge
                pl.BlockSpec((1, Cin, A),
                             lambda n, r: (n, 0, jnp.minimum((r + 1) * LA, nblk - 1))),
                full((Cmid, Cin)), full((Cmid, 1)),
                full((Cmid, ksize * ksize)), full((Cmid, 1)),
                full((Cout, Cmid)), full((Cout, 1)),
            ],
            out_specs=pl.BlockSpec((1, Cout, L), lambda n, r: (n, 0, r)),
        ),
        compiler_params=pltpu.CompilerParams(
            # Independent (n, row-tile) work items -> shard across both TCs on v7x.
            dimension_semantics=("parallel", "parallel"),
            vmem_limit_bytes=int(budget),
        ),
    )(x_flat, x_flat, x_flat, w1, b1, wd, bd, w2, b2)

    return out.reshape(N, Cout, H, W)


# ------------------------- parameter construction ----------------------------

def _fold_bn(gamma, beta, mean, var, eps=1e-5):
    scale = gamma / jnp.sqrt(var + eps)
    bias = beta - mean * scale
    return scale, bias


def make_params(key, in_channels, out_channels, kernel_size=3, expand_ratio=6):
    """Random conv weights + BN stats, with BN scales folded into the weights."""
    mid = int(round(in_channels * expand_ratio))
    ks = jax.random.split(key, 15)

    w1 = jax.random.normal(ks[0], (mid, in_channels), jnp.float32) * 0.2
    wd = jax.random.normal(ks[1], (mid, kernel_size, kernel_size), jnp.float32) * 0.2
    w2 = jax.random.normal(ks[2], (out_channels, mid), jnp.float32) * 0.2

    def bn(kg, kb, km, kv, c):
        gamma = 0.5 + jax.random.uniform(kg, (c,), jnp.float32)
        beta = jax.random.normal(kb, (c,), jnp.float32) * 0.1
        mean = jax.random.normal(km, (c,), jnp.float32) * 0.1
        var = 0.5 + jax.random.uniform(kv, (c,), jnp.float32)
        return _fold_bn(gamma, beta, mean, var)

    s1, b1 = bn(ks[3], ks[4], ks[5], ks[6], mid)
    sd, bd = bn(ks[7], ks[8], ks[9], ks[10], mid)
    s2, b2 = bn(ks[11], ks[12], ks[13], ks[14], out_channels)

    w1f = w1 * s1[:, None]
    wdf = (wd * sd[:, None, None]).reshape(mid, kernel_size * kernel_size)
    w2f = w2 * s2[:, None]

    params = (w1f, b1.reshape(mid, 1), wdf, bd.reshape(mid, 1),
              w2f, b2.reshape(out_channels, 1))
    return params, mid


# ------------------------------ pure-JAX ref ----------------------------------

def ref_nchw(x, w1f, b1, wdf, bd, w2f, b2, *, ksize=3):
    N, Cin, H, W = x.shape
    p = ksize // 2
    h = jnp.einsum('mc,nchw->nmhw', w1f, x) + b1.reshape(1, -1, 1, 1)
    h = jnp.clip(h, 0.0, 6.0)
    hp = jnp.pad(h, ((0, 0), (0, 0), (p, p), (p, p)))
    wd3 = wdf.reshape(-1, ksize, ksize)
    acc = jnp.zeros_like(h)
    for dh in range(ksize):
        for dw in range(ksize):
            acc = acc + hp[:, :, dh:dh + H, dw:dw + W] * wd3[:, dh, dw].reshape(1, -1, 1, 1)
    d = jnp.clip(acc + bd.reshape(1, -1, 1, 1), 0.0, 6.0)
    y = jnp.einsum('om,nmhw->nohw', w2f, d) + b2.reshape(1, -1, 1, 1)
    return y


if __name__ == "__main__":
    key = jax.random.PRNGKey(0)

    configs = [
        # (N, Cin, H,  W,  Cout, K, expand, row_tile override)
        (2, 4, 16, 16, 8, 3, 6, None),   # auto tile (R=1): largest-tile path
        (2, 4, 32, 16, 8, 3, 6, 8),      # forced R=4: exercises interior halos
    ]

    for cfg_i, (N, Cin, H, W, Cout, K, expand, rt) in enumerate(configs):
        kx, kp, key = jax.random.split(key, 3)
        x_nchw = jax.random.normal(kx, (N, Cin, H, W), jnp.float32)
        params, Cmid = make_params(kp, Cin, Cout, kernel_size=K, expand_ratio=expand)
        ref = ref_nchw(x_nchw, *params, ksize=K)

        # Strict f32 check: validates indexing / halo handling exactly.
        out32 = inverted_block(x_nchw, params, ksize=K,
                               depthwise_bf16=False, row_tile=rt)
        out32 = jax.block_until_ready(out32)
        assert out32.shape == (N, Cout, H, W), (cfg_i, out32.shape)
        assert jnp.allclose(out32, ref, atol=1e-3, rtol=1e-3), \
            (cfg_i, float(jnp.max(jnp.abs(out32 - ref))))

        # Chip-default path (bf16 depthwise on v6e/v7x) with relaxed tolerance.
        out = inverted_block(x_nchw, params, ksize=K, row_tile=rt)
        out = jax.block_until_ready(out)
        assert out.shape == (N, Cout, H, W), (cfg_i, out.shape)
        assert jnp.allclose(out, ref, atol=1.5e-1, rtol=5e-2), \
            (cfg_i, float(jnp.max(jnp.abs(out - ref))))

    print("KERNEL_OK")
</pallas_src>

<mosaic_0001>
module attributes {stable_mosaic.version = 11 : i64} {
  func.func @_inverted_block_kernel(%arg0: i32, %arg1: i32, %arg2: memref<1x4x128xf32, #tpu.memory_space<vmem>>, %arg3: memref<1x4x256xf32, #tpu.memory_space<vmem>>, %arg4: memref<1x4x128xf32, #tpu.memory_space<vmem>>, %arg5: memref<24x4xf32, #tpu.memory_space<vmem>>, %arg6: memref<24x1xf32, #tpu.memory_space<vmem>>, %arg7: memref<24x9xf32, #tpu.memory_space<vmem>>, %arg8: memref<24x1xf32, #tpu.memory_space<vmem>>, %arg9: memref<8x24xf32, #tpu.memory_space<vmem>>, %arg10: memref<8x1xf32, #tpu.memory_space<vmem>>, %arg11: memref<1x8x256xf32, #tpu.memory_space<vmem>>) attributes {dimension_semantics = [#tpu.dimension_semantics<parallel>, #tpu.dimension_semantics<parallel>], iteration_bounds = array<i64: 2, 1>, scalar_prefetch = 0 : i64, scratch_operands = 0 : i64, tpu.core_type = #tpu.core_type<tc>, window_params = [{transform_indices = @transform_0, window_bounds = array<i64: 1, 4, 128>}, {transform_indices = @transform_1, window_bounds = array<i64: 1, 4, 256>}, {transform_indices = @transform_2, window_bounds = array<i64: 1, 4, 128>}, {pipeline_mode = #tpu.pipeline_mode<synchronous>, transform_indices = @transform_3, window_bounds = array<i64: 24, 4>}, {pipeline_mode = #tpu.pipeline_mode<synchronous>, transform_indices = @transform_4, window_bounds = array<i64: 24, 1>}, {pipeline_mode = #tpu.pipeline_mode<synchronous>, transform_indices = @transform_5, window_bounds = array<i64: 24, 9>}, {pipeline_mode = #tpu.pipeline_mode<synchronous>, transform_indices = @transform_6, window_bounds = array<i64: 24, 1>}, {pipeline_mode = #tpu.pipeline_mode<synchronous>, transform_indices = @transform_7, window_bounds = array<i64: 8, 24>}, {pipeline_mode = #tpu.pipeline_mode<synchronous>, transform_indices = @transform_8, window_bounds = array<i64: 8, 1>}, {transform_indices = @transform_9, window_bounds = array<i64: 1, 8, 256>}]} {
    %c0 = arith.constant 0 : index
    %c0_0 = arith.constant 0 : index
    %c0_1 = arith.constant 0 : index
    %0 = vector.load %arg2[%c0, %c0_0, %c0_1] : memref<1x4x128xf32, #tpu.memory_space<vmem>>, vector<1x4x128xf32>
    %1 = vector.shape_cast %0 : vector<1x4x128xf32> to vector<4x128xf32>
    %c0_2 = arith.constant 0 : index
    %c0_3 = arith.constant 0 : index
    %c0_4 = arith.constant 0 : index
    %2 = vector.load %arg3[%c0_2, %c0_3, %c0_4] : memref<1x4x256xf32, #tpu.memory_space<vmem>>, vector<1x4x256xf32>
    %3 = vector.shape_cast %2 : vector<1x4x256xf32> to vector<4x256xf32>
    %c0_5 = arith.constant 0 : index
    %c0_6 = arith.constant 0 : index
    %c0_7 = arith.constant 0 : index
    %4 = vector.load %arg4[%c0_5, %c0_6, %c0_7] : memref<1x4x128xf32, #tpu.memory_space<vmem>>, vector<1x4x128xf32>
    %5 = vector.shape_cast %4 : vector<1x4x128xf32> to vector<4x128xf32>
    %6 = tpu.concatenate %1, %3, %5 in 1 : vector<4x128xf32>, vector<4x256xf32>, vector<4x128xf32> -> vector<4x512xf32>
    %c0_8 = arith.constant 0 : index
    %c0_9 = arith.constant 0 : index
    %7 = vector.load %arg5[%c0_8, %c0_9] : memref<24x4xf32, #tpu.memory_space<vmem>>, vector<24x4xf32>
    %8 = vector.extract_strided_slice %7 {offsets = [0, 0], sizes = [24, 1], strides = [1, 1]} : vector<24x4xf32> to vector<24x1xf32>
    %9 = vector.extract_strided_slice %6 {offsets = [0, 0], sizes = [1, 512], strides = [1, 1]} : vector<4x512xf32> to vector<1x512xf32>
    %10 = vector.broadcast %8 : vector<24x1xf32> to vector<24x512xf32>
    %11 = vector.broadcast %9 : vector<1x512xf32> to vector<24x512xf32>
    %12 = arith.mulf %10, %11 : vector<24x512xf32>
    %13 = vector.extract_strided_slice %7 {offsets = [0, 1], sizes = [24, 1], strides = [1, 1]} : vector<24x4xf32> to vector<24x1xf32>
    %14 = vector.extract_strided_slice %6 {offsets = [1, 0], sizes = [1, 512], strides = [1, 1]} : vector<4x512xf32> to vector<1x512xf32>
    %15 = vector.broadcast %13 : vector<24x1xf32> to vector<24x512xf32>
    %16 = vector.broadcast %14 : vector<1x512xf32> to vector<24x512xf32>
    %17 = arith.mulf %15, %16 : vector<24x512xf32>
    %18 = arith.addf %12, %17 : vector<24x512xf32>
    %19 = vector.extract_strided_slice %7 {offsets = [0, 2], sizes = [24, 1], strides = [1, 1]} : vector<24x4xf32> to vector<24x1xf32>
    %20 = vector.extract_strided_slice %6 {offsets = [2, 0], sizes = [1, 512], strides = [1, 1]} : vector<4x512xf32> to vector<1x512xf32>
    %21 = vector.broadcast %19 : vector<24x1xf32> to vector<24x512xf32>
    %22 = vector.broadcast %20 : vector<1x512xf32> to vector<24x512xf32>
    %23 = arith.mulf %21, %22 : vector<24x512xf32>
    %24 = arith.addf %18, %23 : vector<24x512xf32>
    %25 = vector.extract_strided_slice %7 {offsets = [0, 3], sizes = [24, 1], strides = [1, 1]} : vector<24x4xf32> to vector<24x1xf32>
    %26 = vector.extract_strided_slice %6 {offsets = [3, 0], sizes = [1, 512], strides = [1, 1]} : vector<4x512xf32> to vector<1x512xf32>
    %27 = vector.broadcast %25 : vector<24x1xf32> to vector<24x512xf32>
    %28 = vector.broadcast %26 : vector<1x512xf32> to vector<24x512xf32>
    %29 = arith.mulf %27, %28 : vector<24x512xf32>
    %30 = arith.addf %24, %29 : vector<24x512xf32>
    %c0_10 = arith.constant 0 : index
    %c0_11 = arith.constant 0 : index
    %31 = vector.load %arg6[%c0_10, %c0_11] : memref<24x1xf32, #tpu.memory_space<vmem>>, vector<24x1xf32>
    %32 = vector.broadcast %31 : vector<24x1xf32> to vector<24x512xf32>
    %33 = arith.addf %30, %32 : vector<24x512xf32>
    %cst = arith.constant 0.000000e+00 : f32
    %cst_12 = arith.constant 6.000000e+00 : f32
    %34 = vector.broadcast %cst : f32 to vector<24x512xf32>
    %35 = arith.maximumf %34, %33 : vector<24x512xf32>
    %36 = vector.broadcast %cst_12 : f32 to vector<24x512xf32>
    %37 = arith.minimumf %36, %35 : vector<24x512xf32>
    %38 = tpu.iota {dimensions = array<i32: 1>} : vector<1x512xi32>
    %c128_i32 = arith.constant 128 : i32
    %39 = vector.broadcast %c128_i32 : i32 to vector<1x512xi32>
    %40 = arith.cmpi sge, %38, %39 : vector<1x512xi32>
    %c384_i32 = arith.constant 384 : i32
    %41 = vector.broadcast %c384_i32 : i32 to vector<1x512xi32>
    %42 = arith.cmpi slt, %38, %41 : vector<1x512xi32>
    %43 = arith.andi %40, %42 : vector<1x512xi1>
    %c128_i32_13 = arith.constant 128 : i32
    %44 = vector.broadcast %c128_i32_13 : i32 to vector<1x512xi32>
    %45 = arith.cmpi slt, %38, %44 : vector<1x512xi32>
    %c0_i32 = arith.constant 0 : i32
    %46 = arith.cmpi sgt, %arg1, %c0_i32 : i32
    %47 = vector.broadcast %46 : i1 to vector<1x512xi1>
    %48 = arith.andi %45, %47 : vector<1x512xi1>
    %49 = arith.ori %43, %48 : vector<1x512xi1>
    %c384_i32_14 = arith.constant 384 : i32
    %50 = vector.broadcast %c384_i32_14 : i32 to vector<1x512xi32>
    %51 = arith.cmpi sge, %38, %50 : vector<1x512xi32>
    %c0_i32_15 = arith.constant 0 : i32
    %52 = arith.cmpi slt, %arg1, %c0_i32_15 : i32
    %53 = vector.broadcast %52 : i1 to vector<1x512xi1>
    %54 = arith.andi %51, %53 : vector<1x512xi1>
    %55 = arith.ori %49, %54 : vector<1x512xi1>
    %cst_16 = arith.constant 0.000000e+00 : f32
    %56 = vector.shape_cast %55 : vector<1x512xi1> to vector<1x512xi1>
    %57 = vector.broadcast %56 : vector<1x512xi1> to vector<24x512xi1>
    %58 = vector.broadcast %cst_16 : f32 to vector<24x512xf32>
    %59 = arith.select %57, %37, %58 : vector<24x512xi1>, vector<24x512xf32>
    %c0_17 = arith.constant 0 : index
    %c0_18 = arith.constant 0 : index
    %60 = vector.load %arg7[%c0_17, %c0_18] : memref<24x9xf32, #tpu.memory_space<vmem>>, vector<24x9xf32>
    %61 = tpu.iota {dimensions = array<i32: 1>} : vector<1x256xi32>
    %c16_i32 = arith.constant 16 : i32
    %c0_i32_19 = arith.constant 0 : i32
    %62 = arith.cmpi eq, %c16_i32, %c0_i32_19 : i32
    %c1_i32 = arith.constant 1 : i32
    %63 = arith.select %62, %c1_i32, %c16_i32 : i32
    %64 = vector.broadcast %63 : i32 to vector<1x256xi32>
    %65 = arith.remsi %61, %64 : vector<1x256xi32>
    %c0_i32_20 = arith.constant 0 : i32
    %66 = vector.broadcast %c0_i32_20 : i32 to vector<1x256xi32>
    %67 = arith.cmpi ne, %65, %66 : vector<1x256xi32>
    %c0_i32_21 = arith.constant 0 : i32
    %68 = vector.broadcast %c0_i32_21 : i32 to vector<1x256xi32>
    %69 = arith.cmpi slt, %65, %68 : vector<1x256xi32>
    %c0_i32_22 = arith.constant 0 : i32
    %70 = arith.cmpi slt, %63, %c0_i32_22 : i32
    %71 = vector.broadcast %70 : i1 to vector<1x256xi1>
    %72 = vector.broadcast %71 : vector<1x256xi1> to vector<1x256xi1>
    %73 = arith.xori %69, %72 : vector<1x256xi1>
    %74 = arith.andi %73, %67 : vector<1x256xi1>
    %75 = vector.broadcast %63 : i32 to vector<1x256xi32>
    %76 = arith.addi %65, %75 : vector<1x256xi32>
    %77 = arith.select %74, %76, %65 : vector<1x256xi1>, vector<1x256xi32>
    %c-1_i32 = arith.constant -1 : i32
    %78 = vector.broadcast %c-1_i32 : i32 to vector<1x256xi32>
    %79 = arith.addi %77, %78 : vector<1x256xi32>
    %c0_i32_23 = arith.constant 0 : i32
    %80 = vector.broadcast %c0_i32_23 : i32 to vector<1x256xi32>
    %81 = arith.cmpi sge, %79, %80 : vector<1x256xi32>
    %c-1_i32_24 = arith.constant -1 : i32
    %82 = vector.broadcast %c-1_i32_24 : i32 to vector<1x256xi32>
    %83 = arith.addi %77, %82 : vector<1x256xi32>
    %c16_i32_25 = arith.constant 16 : i32
    %84 = vector.broadcast %c16_i32_25 : i32 to vector<1x256xi32>
    %85 = arith.cmpi slt, %83, %84 : vector<1x256xi32>
    %86 = arith.andi %81, %85 : vector<1x256xi1>
    %c1_i32_26 = arith.constant 1 : i32
    %87 = vector.broadcast %c1_i32_26 : i32 to vector<1x256xi32>
    %88 = arith.addi %77, %87 : vector<1x256xi32>
    %c0_i32_27 = arith.constant 0 : i32
    %89 = vector.broadcast %c0_i32_27 : i32 to vector<1x256xi32>
    %90 = arith.cmpi sge, %88, %89 : vector<1x256xi32>
    %c1_i32_28 = arith.constant 1 : i32
    %91 = vector.broadcast %c1_i32_28 : i32 to vector<1x256xi32>
    %92 = arith.addi %77, %91 : vector<1x256xi32>
    %c16_i32_29 = arith.constant 16 : i32
    %93 = vector.broadcast %c16_i32_29 : i32 to vector<1x256xi32>
    %94 = arith.cmpi slt, %92, %93 : vector<1x256xi32>
    %95 = arith.andi %90, %94 : vector<1x256xi1>
    %cst_30 = arith.constant 0.000000e+00 : f32
    %96 = vector.broadcast %cst_30 : f32 to vector<24x256xf32>
    %c17_i32 = arith.constant 17 : i32
    %97 = tpu.dynamic_rotate %59 by %c17_i32 dim 1 : vector<24x512xf32>, i32 -> vector<24x512xf32>
    %98 = vector.extract_strided_slice %97 {offsets = [0, 128], sizes = [24, 256], strides = [1, 1]} : vector<24x512xf32> to vector<24x256xf32>
    %99 = vector.extract_strided_slice %60 {offsets = [0, 0], sizes = [24, 1], strides = [1, 1]} : vector<24x9xf32> to vector<24x1xf32>
    %100 = vector.broadcast %99 : vector<24x1xf32> to vector<24x256xf32>
    %101 = arith.mulf %98, %100 : vector<24x256xf32>
    %cst_31 = arith.constant 0.000000e+00 : f32
    %102 = vector.broadcast %cst_31 : f32 to vector<24x256xf32>
    %103 = vector.shape_cast %86 : vector<1x256xi1> to vector<1x256xi1>
    %104 = vector.broadcast %103 : vector<1x256xi1> to vector<24x256xi1>
    %105 = arith.select %104, %101, %102 : vector<24x256xi1>, vector<24x256xf32>
    %106 = arith.addf %96, %105 : vector<24x256xf32>
    %c16_i32_32 = arith.constant 16 : i32
    %107 = tpu.dynamic_rotate %59 by %c16_i32_32 dim 1 : vector<24x512xf32>, i32 -> vector<24x512xf32>
    %108 = vector.extract_strided_slice %107 {offsets = [0, 128], sizes = [24, 256], strides = [1, 1]} : vector<24x512xf32> to vector<24x256xf32>
    %109 = vector.extract_strided_slice %60 {offsets = [0, 1], sizes = [24, 1], strides = [1, 1]} : vector<24x9xf32> to vector<24x1xf32>
    %110 = vector.broadcast %109 : vector<24x1xf32> to vector<24x256xf32>
    %111 = arith.mulf %108, %110 : vector<24x256xf32>
    %112 = arith.addf %106, %111 : vector<24x256xf32>
    %c15_i32 = arith.constant 15 : i32
    %113 = tpu.dynamic_rotate %59 by %c15_i32 dim 1 : vector<24x512xf32>, i32 -> vector<24x512xf32>
    %114 = vector.extract_strided_slice %113 {offsets = [0, 128], sizes = [24, 256], strides = [1, 1]} : vector<24x512xf32> to vector<24x256xf32>
    %115 = vector.extract_strided_slice %60 {offsets = [0, 2], sizes = [24, 1], strides = [1, 1]} : vector<24x9xf32> to vector<24x1xf32>
    %116 = vector.broadcast %115 : vector<24x1xf32> to vector<24x256xf32>
    %117 = arith.mulf %114, %116 : vector<24x256xf32>
    %cst_33 = arith.constant 0.000000e+00 : f32
    %118 = vector.broadcast %cst_33 : f32 to vector<24x256xf32>
    %119 = vector.shape_cast %95 : vector<1x256xi1> to vector<1x256xi1>
    %120 = vector.broadcast %119 : vector<1x256xi1> to vector<24x256xi1>
    %121 = arith.select %120, %117, %118 : vector<24x256xi1>, vector<24x256xf32>
    %122 = arith.addf %112, %121 : vector<24x256xf32>
    %c1_i32_34 = arith.constant 1 : i32
    %123 = tpu.dynamic_rotate %59 by %c1_i32_34 dim 1 : vector<24x512xf32>, i32 -> vector<24x512xf32>
    %124 = vector.extract_strided_slice %123 {offsets = [0, 128], sizes = [24, 256], strides = [1, 1]} : vector<24x512xf32> to vector<24x256xf32>
    %125 = vector.extract_strided_slice %60 {offsets = [0, 3], sizes = [24, 1], strides = [1, 1]} : vector<24x9xf32> to vector<24x1xf32>
    %126 = vector.broadcast %125 : vector<24x1xf32> to vector<24x256xf32>
    %127 = arith.mulf %124, %126 : vector<24x256xf32>
    %cst_35 = arith.constant 0.000000e+00 : f32
    %128 = vector.broadcast %cst_35 : f32 to vector<24x256xf32>
    %129 = vector.shape_cast %86 : vector<1x256xi1> to vector<1x256xi1>
    %130 = vector.broadcast %129 : vector<1x256xi1> to vector<24x256xi1>
    %131 = arith.select %130, %127, %128 : vector<24x256xi1>, vector<24x256xf32>
    %132 = arith.addf %122, %131 : vector<24x256xf32>
    %133 = vector.extract_strided_slice %59 {offsets = [0, 128], sizes = [24, 256], strides = [1, 1]} : vector<24x512xf32> to vector<24x256xf32>
    %134 = vector.extract_strided_slice %60 {offsets = [0, 4], sizes = [24, 1], strides = [1, 1]} : vector<24x9xf32> to vector<24x1xf32>
    %135 = vector.broadcast %134 : vector<24x1xf32> to vector<24x256xf32>
    %136 = arith.mulf %133, %135 : vector<24x256xf32>
    %137 = arith.addf %132, %136 : vector<24x256xf32>
    %c511_i32 = arith.constant 511 : i32
    %138 = tpu.dynamic_rotate %59 by %c511_i32 dim 1 : vector<24x512xf32>, i32 -> vector<24x512xf32>
    %139 = vector.extract_strided_slice %138 {offsets = [0, 128], sizes = [24, 256], strides = [1, 1]} : vector<24x512xf32> to vector<24x256xf32>
    %140 = vector.extract_strided_slice %60 {offsets = [0, 5], sizes = [24, 1], strides = [1, 1]} : vector<24x9xf32> to vector<24x1xf32>
    %141 = vector.broadcast %140 : vector<24x1xf32> to vector<24x256xf32>
    %142 = arith.mulf %139, %141 : vector<24x256xf32>
    %cst_36 = arith.constant 0.000000e+00 : f32
    %143 = vector.broadcast %cst_36 : f32 to vector<24x256xf32>
    %144 = vector.shape_cast %95 : vector<1x256xi1> to vector<1x256xi1>
    %145 = vector.broadcast %144 : vector<1x256xi1> to vector<24x256xi1>
    %146 = arith.select %145, %142, %143 : vector<24x256xi1>, vector<24x256xf32>
    %147 = arith.addf %137, %146 : vector<24x256xf32>
    %c497_i32 = arith.constant 497 : i32
    %148 = tpu.dynamic_rotate %59 by %c497_i32 dim 1 : vector<24x512xf32>, i32 -> vector<24x512xf32>
    %149 = vector.extract_strided_slice %148 {offsets = [0, 128], sizes = [24, 256], strides = [1, 1]} : vector<24x512xf32> to vector<24x256xf32>
    %150 = vector.extract_strided_slice %60 {offsets = [0, 6], sizes = [24, 1], strides = [1, 1]} : vector<24x9xf32> to vector<24x1xf32>
    %151 = vector.broadcast %150 : vector<24x1xf32> to vector<24x256xf32>
    %152 = arith.mulf %149, %151 : vector<24x256xf32>
    %cst_37 = arith.constant 0.000000e+00 : f32
    %153 = vector.broadcast %cst_37 : f32 to vector<24x256xf32>
    %154 = vector.shape_cast %86 : vector<1x256xi1> to vector<1x256xi1>
    %155 = vector.broadcast %154 : vector<1x256xi1> to vector<24x256xi1>
    %156 = arith.select %155, %152, %153 : vector<24x256xi1>, vector<24x256xf32>
    %157 = arith.addf %147, %156 : vector<24x256xf32>
    %c496_i32 = arith.constant 496 : i32
    %158 = tpu.dynamic_rotate %59 by %c496_i32 dim 1 : vector<24x512xf32>, i32 -> vector<24x512xf32>
    %159 = vector.extract_strided_slice %158 {offsets = [0, 128], sizes = [24, 256], strides = [1, 1]} : vector<24x512xf32> to vector<24x256xf32>
    %160 = vector.extract_strided_slice %60 {offsets = [0, 7], sizes = [24, 1], strides = [1, 1]} : vector<24x9xf32> to vector<24x1xf32>
    %161 = vector.broadcast %160 : vector<24x1xf32> to vector<24x256xf32>
    %162 = arith.mulf %159, %161 : vector<24x256xf32>
    %163 = arith.addf %157, %162 : vector<24x256xf32>
    %c495_i32 = arith.constant 495 : i32
    %164 = tpu.dynamic_rotate %59 by %c495_i32 dim 1 : vector<24x512xf32>, i32 -> vector<24x512xf32>
    %165 = vector.extract_strided_slice %164 {offsets = [0, 128], sizes = [24, 256], strides = [1, 1]} : vector<24x512xf32> to vector<24x256xf32>
    %166 = vector.extract_strided_slice %60 {offsets = [0, 8], sizes = [24, 1], strides = [1, 1]} : vector<24x9xf32> to vector<24x1xf32>
    %167 = vector.broadcast %166 : vector<24x1xf32> to vector<24x256xf32>
    %168 = arith.mulf %165, %167 : vector<24x256xf32>
    %cst_38 = arith.constant 0.000000e+00 : f32
    %169 = vector.broadcast %cst_38 : f32 to vector<24x256xf32>
    %170 = vector.shape_cast %95 : vector<1x256xi1> to vector<1x256xi1>
    %171 = vector.broadcast %170 : vector<1x256xi1> to vector<24x256xi1>
    %172 = arith.select %171, %168, %169 : vector<24x256xi1>, vector<24x256xf32>
    %173 = arith.addf %163, %172 : vector<24x256xf32>
    %c0_39 = arith.constant 0 : index
    %c0_40 = arith.constant 0 : index
    %174 = vector.load %arg8[%c0_39, %c0_40] : memref<24x1xf32, #tpu.memory_space<vmem>>, vector<24x1xf32>
    %175 = vector.broadcast %174 : vector<24x1xf32> to vector<24x256xf32>
    %176 = arith.addf %173, %175 : vector<24x256xf32>
    %cst_41 = arith.constant 0.000000e+00 : f32
    %cst_42 = arith.constant 6.000000e+00 : f32
    %177 = vector.broadcast %cst_41 : f32 to vector<24x256xf32>
    %178 = arith.maximumf %177, %176 : vector<24x256xf32>
    %179 = vector.broadcast %cst_42 : f32 to vector<24x256xf32>
    %180 = arith.minimumf %179, %178 : vector<24x256xf32>
    %c0_43 = arith.constant 0 : index
    %c0_44 = arith.constant 0 : index
    %181 = vector.load %arg9[%c0_43, %c0_44] : memref<8x24xf32, #tpu.memory_space<vmem>>, vector<8x24xf32>
    %182 = vector.extract_strided_slice %181 {offsets = [0, 0], sizes = [8, 1], strides = [1, 1]} : vector<8x24xf32> to vector<8x1xf32>
    %183 = vector.extract_strided_slice %180 {offsets = [0, 0], sizes = [1, 256], strides = [1, 1]} : vector<24x256xf32> to vector<1x256xf32>
    %184 = vector.broadcast %182 : vector<8x1xf32> to vector<8x256xf32>
    %185 = vector.broadcast %183 : vector<1x256xf32> to vector<8x256xf32>
    %186 = arith.mulf %184, %185 : vector<8x256xf32>
    %187 = vector.extract_strided_slice %181 {offsets = [0, 1], sizes = [8, 1], strides = [1, 1]} : vector<8x24xf32> to vector<8x1xf32>
    %188 = vector.extract_strided_slice %180 {offsets = [1, 0], sizes = [1, 256], strides = [1, 1]} : vector<24x256xf32> to vector<1x256xf32>
    %189 = vector.broadcast %187 : vector<8x1xf32> to vector<8x256xf32>
    %190 = vector.broadcast %188 : vector<1x256xf32> to vector<8x256xf32>
    %191 = arith.mulf %189, %190 : vector<8x256xf32>
    %192 = arith.addf %186, %191 : vector<8x256xf32>
    %193 = vector.extract_strided_slice %181 {offsets = [0, 2], sizes = [8, 1], strides = [1, 1]} : vector<8x24xf32> to vector<8x1xf32>
    %194 = vector.extract_strided_slice %180 {offsets = [2, 0], sizes = [1, 256], strides = [1, 1]} : vector<24x256xf32> to vector<1x256xf32>
    %195 = vector.broadcast %193 : vector<8x1xf32> to vector<8x256xf32>
    %196 = vector.broadcast %194 : vector<1x256xf32> to vector<8x256xf32>
    %197 = arith.mulf %195, %196 : vector<8x256xf32>
    %198 = arith.addf %192, %197 : vector<8x256xf32>
    %199 = vector.extract_strided_slice %181 {offsets = [0, 3], sizes = [8, 1], strides = [1, 1]} : vector<8x24xf32> to vector<8x1xf32>
    %200 = vector.extract_strided_slice %180 {offsets = [3, 0], sizes = [1, 256], strides = [1, 1]} : vector<24x256xf32> to vector<1x256xf32>
    %201 = vector.broadcast %199 : vector<8x1xf32> to vector<8x256xf32>
    %202 = vector.broadcast %200 : vector<1x256xf32> to vector<8x256xf32>
    %203 = arith.mulf %201, %202 : vector<8x256xf32>
    %204 = arith.addf %198, %203 : vector<8x256xf32>
    %205 = vector.extract_strided_slice %181 {offsets = [0, 4], sizes = [8, 1], strides = [1, 1]} : vector<8x24xf32> to vector<8x1xf32>
    %206 = vector.extract_strided_slice %180 {offsets = [4, 0], sizes = [1, 256], strides = [1, 1]} : vector<24x256xf32> to vector<1x256xf32>
    %207 = vector.broadcast %205 : vector<8x1xf32> to vector<8x256xf32>
    %208 = vector.broadcast %206 : vector<1x256xf32> to vector<8x256xf32>
    %209 = arith.mulf %207, %208 : vector<8x256xf32>
    %210 = arith.addf %204, %209 : vector<8x256xf32>
    %211 = vector.extract_strided_slice %181 {offsets = [0, 5], sizes = [8, 1], strides = [1, 1]} : vector<8x24xf32> to vector<8x1xf32>
    %212 = vector.extract_strided_slice %180 {offsets = [5, 0], sizes = [1, 256], strides = [1, 1]} : vector<24x256xf32> to vector<1x256xf32>
    %213 = vector.broadcast %211 : vector<8x1xf32> to vector<8x256xf32>
    %214 = vector.broadcast %212 : vector<1x256xf32> to vector<8x256xf32>
    %215 = arith.mulf %213, %214 : vector<8x256xf32>
    %216 = arith.addf %210, %215 : vector<8x256xf32>
    %217 = vector.extract_strided_slice %181 {offsets = [0, 6], sizes = [8, 1], strides = [1, 1]} : vector<8x24xf32> to vector<8x1xf32>
    %218 = vector.extract_strided_slice %180 {offsets = [6, 0], sizes = [1, 256], strides = [1, 1]} : vector<24x256xf32> to vector<1x256xf32>
    %219 = vector.broadcast %217 : vector<8x1xf32> to vector<8x256xf32>
    %220 = vector.broadcast %218 : vector<1x256xf32> to vector<8x256xf32>
    %221 = arith.mulf %219, %220 : vector<8x256xf32>
    %222 = arith.addf %216, %221 : vector<8x256xf32>
    %223 = vector.extract_strided_slice %181 {offsets = [0, 7], sizes = [8, 1], strides = [1, 1]} : vector<8x24xf32> to vector<8x1xf32>
    %224 = vector.extract_strided_slice %180 {offsets = [7, 0], sizes = [1, 256], strides = [1, 1]} : vector<24x256xf32> to vector<1x256xf32>
    %225 = vector.broadcast %223 : vector<8x1xf32> to vector<8x256xf32>
    %226 = vector.broadcast %224 : vector<1x256xf32> to vector<8x256xf32>
    %227 = arith.mulf %225, %226 : vector<8x256xf32>
    %228 = arith.addf %222, %227 : vector<8x256xf32>
    %229 = vector.extract_strided_slice %181 {offsets = [0, 8], sizes = [8, 1], strides = [1, 1]} : vector<8x24xf32> to vector<8x1xf32>
    %230 = vector.extract_strided_slice %180 {offsets = [8, 0], sizes = [1, 256], strides = [1, 1]} : vector<24x256xf32> to vector<1x256xf32>
    %231 = vector.broadcast %229 : vector<8x1xf32> to vector<8x256xf32>
    %232 = vector.broadcast %230 : vector<1x256xf32> to vector<8x256xf32>
    %233 = arith.mulf %231, %232 : vector<8x256xf32>
    %234 = arith.addf %228, %233 : vector<8x256xf32>
    %235 = vector.extract_strided_slice %181 {offsets = [0, 9], sizes = [8, 1], strides = [1, 1]} : vector<8x24xf32> to vector<8x1xf32>
    %236 = vector.extract_strided_slice %180 {offsets = [9, 0], sizes = [1, 256], strides = [1, 1]} : vector<24x256xf32> to vector<1x256xf32>
    %237 = vector.broadcast %235 : vector<8x1xf32> to vector<8x256xf32>
    %238 = vector.broadcast %236 : vector<1x256xf32> to vector<8x256xf32>
    %239 = arith.mulf %237, %238 : vector<8x256xf32>
    %240 = arith.addf %234, %239 : vector<8x256xf32>
    %241 = vector.extract_strided_slice %181 {offsets = [0, 10], sizes = [8, 1], strides = [1, 1]} : vector<8x24xf32> to vector<8x1xf32>
    %242 = vector.extract_strided_slice %180 {offsets = [10, 0], sizes = [1, 256], strides = [1, 1]} : vector<24x256xf32> to vector<1x256xf32>
    %243 = vector.broadcast %241 : vector<8x1xf32> to vector<8x256xf32>
    %244 = vector.broadcast %242 : vector<1x256xf32> to vector<8x256xf32>
    %245 = arith.mulf %243, %244 : vector<8x256xf32>
    %246 = arith.addf %240, %245 : vector<8x256xf32>
    %247 = vector.extract_strided_slice %181 {offsets = [0, 11], sizes = [8, 1], strides = [1, 1]} : vector<8x24xf32> to vector<8x1xf32>
    %248 = vector.extract_strided_slice %180 {offsets = [11, 0], sizes = [1, 256], strides = [1, 1]} : vector<24x256xf32> to vector<1x256xf32>
    %249 = vector.broadcast %247 : vector<8x1xf32> to vector<8x256xf32>
    %250 = vector.broadcast %248 : vector<1x256xf32> to vector<8x256xf32>
    %251 = arith.mulf %249, %250 : vector<8x256xf32>
    %252 = arith.addf %246, %251 : vector<8x256xf32>
    %253 = vector.extract_strided_slice %181 {offsets = [0, 12], sizes = [8, 1], strides = [1, 1]} : vector<8x24xf32> to vector<8x1xf32>
    %254 = vector.extract_strided_slice %180 {offsets = [12, 0], sizes = [1, 256], strides = [1, 1]} : vector<24x256xf32> to vector<1x256xf32>
    %255 = vector.broadcast %253 : vector<8x1xf32> to vector<8x256xf32>
    %256 = vector.broadcast %254 : vector<1x256xf32> to vector<8x256xf32>
    %257 = arith.mulf %255, %256 : vector<8x256xf32>
    %258 = arith.addf %252, %257 : vector<8x256xf32>
    %259 = vector.extract_strided_slice %181 {offsets = [0, 13], sizes = [8, 1], strides = [1, 1]} : vector<8x24xf32> to vector<8x1xf32>
    %260 = vector.extract_strided_slice %180 {offsets = [13, 0], sizes = [1, 256], strides = [1, 1]} : vector<24x256xf32> to vector<1x256xf32>
    %261 = vector.broadcast %259 : vector<8x1xf32> to vector<8x256xf32>
    %262 = vector.broadcast %260 : vector<1x256xf32> to vector<8x256xf32>
    %263 = arith.mulf %261, %262 : vector<8x256xf32>
    %264 = arith.addf %258, %263 : vector<8x256xf32>
    %265 = vector.extract_strided_slice %181 {offsets = [0, 14], sizes = [8, 1], strides = [1, 1]} : vector<8x24xf32> to vector<8x1xf32>
    %266 = vector.extract_strided_slice %180 {offsets = [14, 0], sizes = [1, 256], strides = [1, 1]} : vector<24x256xf32> to vector<1x256xf32>
    %267 = vector.broadcast %265 : vector<8x1xf32> to vector<8x256xf32>
    %268 = vector.broadcast %266 : vector<1x256xf32> to vector<8x256xf32>
    %269 = arith.mulf %267, %268 : vector<8x256xf32>
    %270 = arith.addf %264, %269 : vector<8x256xf32>
    %271 = vector.extract_strided_slice %181 {offsets = [0, 15], sizes = [8, 1], strides = [1, 1]} : vector<8x24xf32> to vector<8x1xf32>
    %272 = vector.extract_strided_slice %180 {offsets = [15, 0], sizes = [1, 256], strides = [1, 1]} : vector<24x256xf32> to vector<1x256xf32>
    %273 = vector.broadcast %271 : vector<8x1xf32> to vector<8x256xf32>
    %274 = vector.broadcast %272 : vector<1x256xf32> to vector<8x256xf32>
    %275 = arith.mulf %273, %274 : vector<8x256xf32>
    %276 = arith.addf %270, %275 : vector<8x256xf32>
    %277 = vector.extract_strided_slice %181 {offsets = [0, 16], sizes = [8, 1], strides = [1, 1]} : vector<8x24xf32> to vector<8x1xf32>
    %278 = vector.extract_strided_slice %180 {offsets = [16, 0], sizes = [1, 256], strides = [1, 1]} : vector<24x256xf32> to vector<1x256xf32>
    %279 = vector.broadcast %277 : vector<8x1xf32> to vector<8x256xf32>
    %280 = vector.broadcast %278 : vector<1x256xf32> to vector<8x256xf32>
    %281 = arith.mulf %279, %280 : vector<8x256xf32>
    %282 = arith.addf %276, %281 : vector<8x256xf32>
    %283 = vector.extract_strided_slice %181 {offsets = [0, 17], sizes = [8, 1], strides = [1, 1]} : vector<8x24xf32> to vector<8x1xf32>
    %284 = vector.extract_strided_slice %180 {offsets = [17, 0], sizes = [1, 256], strides = [1, 1]} : vector<24x256xf32> to vector<1x256xf32>
    %285 = vector.broadcast %283 : vector<8x1xf32> to vector<8x256xf32>
    %286 = vector.broadcast %284 : vector<1x256xf32> to vector<8x256xf32>
    %287 = arith.mulf %285, %286 : vector<8x256xf32>
    %288 = arith.addf %282, %287 : vector<8x256xf32>
    %289 = vector.extract_strided_slice %181 {offsets = [0, 18], sizes = [8, 1], strides = [1, 1]} : vector<8x24xf32> to vector<8x1xf32>
    %290 = vector.extract_strided_slice %180 {offsets = [18, 0], sizes = [1, 256], strides = [1, 1]} : vector<24x256xf32> to vector<1x256xf32>
    %291 = vector.broadcast %289 : vector<8x1xf32> to vector<8x256xf32>
    %292 = vector.broadcast %290 : vector<1x256xf32> to vector<8x256xf32>
    %293 = arith.mulf %291, %292 : vector<8x256xf32>
    %294 = arith.addf %288, %293 : vector<8x256xf32>
    %295 = vector.extract_strided_slice %181 {offsets = [0, 19], sizes = [8, 1], strides = [1, 1]} : vector<8x24xf32> to vector<8x1xf32>
    %296 = vector.extract_strided_slice %180 {offsets = [19, 0], sizes = [1, 256], strides = [1, 1]} : vector<24x256xf32> to vector<1x256xf32>
    %297 = vector.broadcast %295 : vector<8x1xf32> to vector<8x256xf32>
    %298 = vector.broadcast %296 : vector<1x256xf32> to vector<8x256xf32>
    %299 = arith.mulf %297, %298 : vector<8x256xf32>
    %300 = arith.addf %294, %299 : vector<8x256xf32>
    %301 = vector.extract_strided_slice %181 {offsets = [0, 20], sizes = [8, 1], strides = [1, 1]} : vector<8x24xf32> to vector<8x1xf32>
    %302 = vector.extract_strided_slice %180 {offsets = [20, 0], sizes = [1, 256], strides = [1, 1]} : vector<24x256xf32> to vector<1x256xf32>
    %303 = vector.broadcast %301 : vector<8x1xf32> to vector<8x256xf32>
    %304 = vector.broadcast %302 : vector<1x256xf32> to vector<8x256xf32>
    %305 = arith.mulf %303, %304 : vector<8x256xf32>
    %306 = arith.addf %300, %305 : vector<8x256xf32>
    %307 = vector.extract_strided_slice %181 {offsets = [0, 21], sizes = [8, 1], strides = [1, 1]} : vector<8x24xf32> to vector<8x1xf32>
    %308 = vector.extract_strided_slice %180 {offsets = [21, 0], sizes = [1, 256], strides = [1, 1]} : vector<24x256xf32> to vector<1x256xf32>
    %309 = vector.broadcast %307 : vector<8x1xf32> to vector<8x256xf32>
    %310 = vector.broadcast %308 : vector<1x256xf32> to vector<8x256xf32>
    %311 = arith.mulf %309, %310 : vector<8x256xf32>
    %312 = arith.addf %306, %311 : vector<8x256xf32>
    %313 = vector.extract_strided_slice %181 {offsets = [0, 22], sizes = [8, 1], strides = [1, 1]} : vector<8x24xf32> to vector<8x1xf32>
    %314 = vector.extract_strided_slice %180 {offsets = [22, 0], sizes = [1, 256], strides = [1, 1]} : vector<24x256xf32> to vector<1x256xf32>
    %315 = vector.broadcast %313 : vector<8x1xf32> to vector<8x256xf32>
    %316 = vector.broadcast %314 : vector<1x256xf32> to vector<8x256xf32>
    %317 = arith.mulf %315, %316 : vector<8x256xf32>
    %318 = arith.addf %312, %317 : vector<8x256xf32>
    %319 = vector.extract_strided_slice %181 {offsets = [0, 23], sizes = [8, 1], strides = [1, 1]} : vector<8x24xf32> to vector<8x1xf32>
    %320 = vector.extract_strided_slice %180 {offsets = [23, 0], sizes = [1, 256], strides = [1, 1]} : vector<24x256xf32> to vector<1x256xf32>
    %321 = vector.broadcast %319 : vector<8x1xf32> to vector<8x256xf32>
    %322 = vector.broadcast %320 : vector<1x256xf32> to vector<8x256xf32>
    %323 = arith.mulf %321, %322 : vector<8x256xf32>
    %324 = arith.addf %318, %323 : vector<8x256xf32>
    %c0_45 = arith.constant 0 : index
    %c0_46 = arith.constant 0 : index
    %325 = vector.load %arg10[%c0_45, %c0_46] : memref<8x1xf32, #tpu.memory_space<vmem>>, vector<8x1xf32>
    %326 = vector.broadcast %325 : vector<8x1xf32> to vector<8x256xf32>
    %327 = arith.addf %324, %326 : vector<8x256xf32>
    %c0_47 = arith.constant 0 : index
    %c0_48 = arith.constant 0 : index
    %c0_49 = arith.constant 0 : index
    %328 = vector.load %arg11[%c0_47, %c0_48, %c0_49] : memref<1x8x256xf32, #tpu.memory_space<vmem>>, vector<1x8x256xf32>
    %329 = vector.shape_cast %328 : vector<1x8x256xf32> to vector<8x256xf32>
    %330 = vector.shape_cast %327 : vector<8x256xf32> to vector<1x8x256xf32>
    tpu.vector_store %arg11[%c0_47, %c0_48, %c0_49], %330 {strides = array<i32>} : memref<1x8x256xf32, #tpu.memory_space<vmem>>, vector<1x8x256xf32>,
    return
  }
  func.func @transform_0(%arg0: i32, %arg1: i32) -> (i32, i32, i32) {
    %c2_i32 = arith.constant 2 : i32
    %0 = arith.muli %arg1, %c2_i32 : i32
    %c1_i32 = arith.constant 1 : i32
    %1 = arith.subi %0, %c1_i32 : i32
    %c0_i32 = arith.constant 0 : i32
    %2 = arith.maxsi %1, %c0_i32 : i32
    %c0_i32_0 = arith.constant 0 : i32
    %c0_i32_1 = arith.constant 0 : i32
    return %arg0, %c0_i32_0, %2 : i32, i32, i32
  }
  func.func @transform_1(%arg0: i32, %arg1: i32) -> (i32, i32, i32) {
    %c0_i32 = arith.constant 0 : i32
    %c0_i32_0 = arith.constant 0 : i32
    return %arg0, %c0_i32, %arg1 : i32, i32, i32
  }
  func.func @transform_2(%arg0: i32, %arg1: i32) -> (i32, i32, i32) {
    %c1_i32 = arith.constant 1 : i32
    %0 = arith.addi %arg1, %c1_i32 : i32
    %c2_i32 = arith.constant 2 : i32
    %1 = arith.muli %0, %c2_i32 : i32
    %c1_i32_0 = arith.constant 1 : i32
    %2 = arith.minsi %1, %c1_i32_0 : i32
    %c0_i32 = arith.constant 0 : i32
    %c0_i32_1 = arith.constant 0 : i32
    return %arg0, %c0_i32, %2 : i32, i32, i32
  }
  func.func @transform_3(%arg0: i32, %arg1: i32) -> (i32, i32) {
    %c0_i32 = arith.constant 0 : i32
    %c0_i32_0 = arith.constant 0 : i32
    %c0_i32_1 = arith.constant 0 : i32
    return %c0_i32, %c0_i32_0 : i32, i32
  }
  func.func @transform_4(%arg0: i32, %arg1: i32) -> (i32, i32) {
    %c0_i32 = arith.constant 0 : i32
    %c0_i32_0 = arith.constant 0 : i32
    %c0_i32_1 = arith.constant 0 : i32
    return %c0_i32, %c0_i32_0 : i32, i32
  }
  func.func @transform_5(%arg0: i32, %arg1: i32) -> (i32, i32) {
    %c0_i32 = arith.constant 0 : i32
    %c0_i32_0 = arith.constant 0 : i32
    %c0_i32_1 = arith.constant 0 : i32
    return %c0_i32, %c0_i32_0 : i32, i32
  }
  func.func @transform_6(%arg0: i32, %arg1: i32) -> (i32, i32) {
    %c0_i32 = arith.constant 0 : i32
    %c0_i32_0 = arith.constant 0 : i32
    %c0_i32_1 = arith.constant 0 : i32
    return %c0_i32, %c0_i32_0 : i32, i32
  }
  func.func @transform_7(%arg0: i32, %arg1: i32) -> (i32, i32) {
    %c0_i32 = arith.constant 0 : i32
    %c0_i32_0 = arith.constant 0 : i32
    %c0_i32_1 = arith.constant 0 : i32
    return %c0_i32, %c0_i32_0 : i32, i32
  }
  func.func @transform_8(%arg0: i32, %arg1: i32) -> (i32, i32) {
    %c0_i32 = arith.constant 0 : i32
    %c0_i32_0 = arith.constant 0 : i32
    %c0_i32_1 = arith.constant 0 : i32
    return %c0_i32, %c0_i32_0 : i32, i32
  }
  func.func @transform_9(%arg0: i32, %arg1: i32) -> (i32, i32, i32) {
    %c0_i32 = arith.constant 0 : i32
    %c0_i32_0 = arith.constant 0 : i32
    return %arg0, %c0_i32, %arg1 : i32, i32, i32
  }
}

</mosaic_0001>

<llo_original>
// kernel: tpu_custom_call.1
$region0: #{tpu_custom_call.1}
  #allocation0 [shape = 'u32[]', space=smem, size = 0x4, offset = 0x4, fixed_abs, tag = 'smem constant byte address 0x4 - core index']
  #allocation1 [shape = 'u32[144,128]{1,0:T(1,128)}', space=vmem, size = 0x12000, scoped, tag = 'internal scratch']
  %s0 = inlined_call_operand.vmem [shape: f32[2,4,256], index: 0, kind: input, shape index: {}]
  %s1 = inlined_call_operand.vmem [shape: f32[2,4,256], index: 1, kind: input, shape index: {}]
  %s2 = inlined_call_operand.vmem [shape: f32[2,4,256], index: 2, kind: input, shape index: {}]
  %s3 = inlined_call_operand.vmem [shape: f32[24,4], index: 3, kind: input, shape index: {}]
  %s4 = inlined_call_operand.vmem [shape: f32[24,1], index: 4, kind: input, shape index: {}]
  %s5 = inlined_call_operand.vmem [shape: f32[24,9], index: 5, kind: input, shape index: {}]
  %s6 = inlined_call_operand.vmem [shape: f32[24,1], index: 6, kind: input, shape index: {}]
  %s7 = inlined_call_operand.vmem [shape: f32[8,24], index: 7, kind: input, shape index: {}]
  %s8 = inlined_call_operand.vmem [shape: f32[8,1], index: 8, kind: input, shape index: {}]
  %s9 = inlined_call_operand.hbm [shape: f32[2,8,256], index: 9, kind: output, shape index: {}]
  %s10 = sld [smem:[#allocation0]]
  $region69: #{tpu_custom_call.1} parent=0
    _
  %s12 = ssub.s32 1, %s10
  %s13 = scalar_select 0, %s12, %s10
  $region1: #{tpu_custom_call.1} parent=0
    #allocation2 [shape = 'u8[16384]{0}', space=vmem, size = 0x4000, scoped, tag = 'output window, operand 0']
    #allocation3 [shape = 's32[2]{0}', space=sflag, size = 0x8, scoped, tag = 'scoped memory for tpu_custom_call.1']
    %14 = vsyncpa [#allocation3], 0
    %s15 = scalar_lea.sflag [#allocation3], 1
    %16 = vsyncpa %s15, 0
    loop: start=0, step=1, limit=4
    $region2: #{tpu_custom_call.1} parent=1 // loop_pre_header
      _
    $region3: #{tpu_custom_call.1} parent=1 // loop_header
      %s18 = sphi 0, %s22
      %p19 = scmp.ge.s32.totalorder %s18, 4
      %s25 = sphi 0, %s37
      %s26 = sphi 0, %s33
      %s27 = sphi 0, %s25
      %s28 = sphi 0, %s26
      %s29 = sphi 0, %s27
      %s30 = sphi 0, %s28
      %s50 = sphi 0, %s52
      %s53 = sphi 0, %s50
      %s54 = sphi 0, %s53
      %s70 = sphi 0, %s54
      %s78 = sphi 0, %s80
      %s81 = sphi 0, %s78
      %s82 = sphi 0, %s81
      %s98 = sphi 0, %s82
      %s114 = sphi 0, %s116
      %s117 = sphi 0, %s114
      %s118 = sphi 0, %s117
      %s134 = sphi 0, %s118
      %s138 = sphi 0, %s138
      %s140 = sphi 0, %s138
      %s141 = sphi 0, %s140
      %s155 = sphi 0, %s141
      %s159 = sphi 0, %s159
      %s161 = sphi 0, %s159
      %s162 = sphi 0, %s161
      %s176 = sphi 0, %s162
      %s180 = sphi 0, %s180
      %s182 = sphi 0, %s180
      %s183 = sphi 0, %s182
      %s197 = sphi 0, %s183
      %s201 = sphi 0, %s201
      %s203 = sphi 0, %s201
      %s204 = sphi 0, %s203
      %s218 = sphi 0, %s204
      %s222 = sphi 0, %s222
      %s224 = sphi 0, %s222
      %s225 = sphi 0, %s224
      %s239 = sphi 0, %s225
      %s243 = sphi 0, %s243
      %s245 = sphi 0, %s243
      %s246 = sphi 0, %s245
      %s260 = sphi 0, %s246
      %s268 = sphi 0, %s270
      %s271 = sphi 0, %s268
      %s272 = sphi 0, %s271
      %s288 = sphi 0, %s272
    $region4: #{tpu_custom_call.1} parent=1 // loop_header_branch
      %21 = sbr.rel (%p19) target = $region8
    $region5: #{tpu_custom_call.1} parent=1 // loop_body
      %s23 = ssub.s32 %s18, 1
      %s24 = ssub.s32 %s18, 2
      %s31 = sadd.s32 1, %s26
      %p32 = scmp.ge.s32.totalorder %s31, 1
      %s33 = scalar_select %p32, 0, %s31
      %s34 = sadd.s32 1, %s25
      %s35 = scalar_select %p32, %s34, %s25
      %p36 = scmp.ge.s32.totalorder %s35, 2
      %s37 = scalar_select %p36, 0, %s35
      %s38 = smul.u32 %s26, 2
      %s39 = ssub.s32 %s38, 1
      %p40 = scmp.gt.s32.totalorder %s39, 0
      %s41 = scalar_select %p40, %s39, 0
      %s42 = smul.u32 %s33, 2
      %s43 = ssub.s32 %s42, 1
      %p44 = scmp.gt.s32.totalorder %s43, 0
      %s45 = scalar_select %p44, %s43, 0
      %s46 = ssub.s32 %s25, %s37
      %s47 = ssub.s32 %s41, %s45
      %s48 = sor.u32 %s46, %s47
      %p49 = scmp.eq.s32.totalorder %s48, 0
      %s51 = sadd.s32 %s50, 1
      %s52 = scalar_select %p49, %s50, %s51
      %p55 = pneg %p49
      %p56 = scmp.eq.s32.totalorder %s18, 1
      %p57 = por %p55, %p56
      %p58 = scmp.ne.s32.totalorder %s50, %s53
      %p59 = scmp.eq.s32.totalorder %s18, 0
      %p60 = por %p58, %p59
      %p61 = scmp.ne.s32.totalorder %s50, %s53
      %p62 = scmp.eq.s32.totalorder %s23, 1
      %p63 = por %p61, %p62
      %p64 = scmp.ne.s32.totalorder %s53, %s54
      %p65 = scmp.eq.s32.totalorder %s23, 0
      %p66 = por %p64, %p65
      %p67 = scmp.ne.s32.totalorder %s53, %s54
      %p68 = scmp.eq.s32.totalorder %s24, 1
      %p69 = por %p67, %p68
      %p71 = scmp.ne.s32.totalorder %s54, %s70
      %p72 = scmp.eq.s32.totalorder %s24, 0
      %p73 = por %p71, %p72
      %s74 = ssub.s32 %s25, %s37
      %s75 = ssub.s32 %s26, %s33
      %s76 = sor.u32 %s74, %s75
      %p77 = scmp.eq.s32.totalorder %s76, 0
      %s79 = sadd.s32 %s78, 1
      %s80 = scalar_select %p77, %s78, %s79
      %p83 = pneg %p77
      %p84 = scmp.eq.s32.totalorder %s18, 1
      %p85 = por %p83, %p84
      %p86 = scmp.ne.s32.totalorder %s78, %s81
      %p87 = scmp.eq.s32.totalorder %s18, 0
      %p88 = por %p86, %p87
      %p89 = scmp.ne.s32.totalorder %s78, %s81
      %p90 = scmp.eq.s32.totalorder %s23, 1
      %p91 = por %p89, %p90
      %p92 = scmp.ne.s32.totalorder %s81, %s82
      %p93 = scmp.eq.s32.totalorder %s23, 0
      %p94 = por %p92, %p93
      %p95 = scmp.ne.s32.totalorder %s81, %s82
      %p96 = scmp.eq.s32.totalorder %s24, 1
      %p97 = por %p95, %p96
      %p99 = scmp.ne.s32.totalorder %s82, %s98
      %p100 = scmp.eq.s32.totalorder %s24, 0
      %p101 = por %p99, %p100
      %s102 = sadd.s32 %s26, 1
      %s103 = smul.u32 %s102, 2
      %p104 = scmp.lt.s32.totalorder %s103, 1
      %s105 = scalar_select %p104, %s103, 1
      %s106 = sadd.s32 %s33, 1
      %s107 = smul.u32 %s106, 2
      %p108 = scmp.lt.s32.totalorder %s107, 1
      %s109 = scalar_select %p108, %s107, 1
      %s110 = ssub.s32 %s25, %s37
      %s111 = ssub.s32 %s105, %s109
      %s112 = sor.u32 %s110, %s111
      %p113 = scmp.eq.s32.totalorder %s112, 0
      %s115 = sadd.s32 %s114, 1
      %s116 = scalar_select %p113, %s114, %s115
      %p119 = pneg %p113
      %p120 = scmp.eq.s32.totalorder %s18, 1
      %p121 = por %p119, %p120
      %p122 = scmp.ne.s32.totalorder %s114, %s117
      %p123 = scmp.eq.s32.totalorder %s18, 0
      %p124 = por %p122, %p123
      %p125 = scmp.ne.s32.totalorder %s114, %s117
      %p126 = scmp.eq.s32.totalorder %s23, 1
      %p127 = por %p125, %p126
      %p128 = scmp.ne.s32.totalorder %s117, %s118
      %p129 = scmp.eq.s32.totalorder %s23, 0
      %p130 = por %p128, %p129
      %p131 = scmp.ne.s32.totalorder %s117, %s118
      %p132 = scmp.eq.s32.totalorder %s24, 1
      %p133 = por %p131, %p132
      %p135 = scmp.ne.s32.totalorder %s118, %s134
      %p136 = scmp.eq.s32.totalorder %s24, 0
      %p137 = por %p135, %p136
      %s139 = sadd.s32 %s138, 1
      %p142 = scmp.eq.s32.totalorder %s18, 1
      %p143 = scmp.ne.s32.totalorder %s138, %s140
      %p144 = scmp.eq.s32.totalorder %s18, 0
      %p145 = por %p143, %p144
      %p146 = scmp.ne.s32.totalorder %s138, %s140
      %p147 = scmp.eq.s32.totalorder %s23, 1
      %p148 = por %p146, %p147
      %p149 = scmp.ne.s32.totalorder %s140, %s141
      %p150 = scmp.eq.s32.totalorder %s23, 0
      %p151 = por %p149, %p150
      %p152 = scmp.ne.s32.totalorder %s140, %s141
      %p153 = scmp.eq.s32.totalorder %s24, 1
      %p154 = por %p152, %p153
      %p156 = scmp.ne.s32.totalorder %s141, %s155
      %p157 = scmp.eq.s32.totalorder %s24, 0
      %p158 = por %p156, %p157
      %s160 = sadd.s32 %s159, 1
      %p163 = scmp.eq.s32.totalorder %s18, 1
      %p164 = scmp.ne.s32.totalorder %s159, %s161
      %p165 = scmp.eq.s32.totalorder %s18, 0
      %p166 = por %p164, %p165
      %p167 = scmp.ne.s32.totalorder %s159, %s161
      %p168 = scmp.eq.s32.totalorder %s23, 1
      %p169 = por %p167, %p168
      %p170 = scmp.ne.s32.totalorder %s161, %s162
      %p171 = scmp.eq.s32.totalorder %s23, 0
      %p172 = por %p170, %p171
      %p173 = scmp.ne.s32.totalorder %s161, %s162
      %p174 = scmp.eq.s32.totalorder %s24, 1
      %p175 = por %p173, %p174
      %p177 = scmp.ne.s32.totalorder %s162, %s176
      %p178 = scmp.eq.s32.totalorder %s24, 0
      %p179 = por %p177, %p178
      %s181 = sadd.s32 %s180, 1
      %p184 = scmp.eq.s32.totalorder %s18, 1
      %p185 = scmp.ne.s32.totalorder %s180, %s182
      %p186 = scmp.eq.s32.totalorder %s18, 0
      %p187 = por %p185, %p186
      %p188 = scmp.ne.s32.totalorder %s180, %s182
      %p189 = scmp.eq.s32.totalorder %s23, 1
      %p190 = por %p188, %p189
      %p191 = scmp.ne.s32.totalorder %s182, %s183
      %p192 = scmp.eq.s32.totalorder %s23, 0
      %p193 = por %p191, %p192
      %p194 = scmp.ne.s32.totalorder %s182, %s183
      %p195 = scmp.eq.s32.totalorder %s24, 1
      %p196 = por %p194, %p195
      %p198 = scmp.ne.s32.totalorder %s183, %s197
      %p199 = scmp.eq.s32.totalorder %s24, 0
      %p200 = por %p198, %p199
      %s202 = sadd.s32 %s201, 1
      %p205 = scmp.eq.s32.totalorder %s18, 1
      %p206 = scmp.ne.s32.totalorder %s201, %s203
      %p207 = scmp.eq.s32.totalorder %s18, 0
      %p208 = por %p206, %p207
      %p209 = scmp.ne.s32.totalorder %s201, %s203
      %p210 = scmp.eq.s32.totalorder %s23, 1
      %p211 = por %p209, %p210
      %p212 = scmp.ne.s32.totalorder %s203, %s204
      %p213 = scmp.eq.s32.totalorder %s23, 0
      %p214 = por %p212, %p213
      %p215 = scmp.ne.s32.totalorder %s203, %s204
      %p216 = scmp.eq.s32.totalorder %s24, 1
      %p217 = por %p215, %p216
      %p219 = scmp.ne.s32.totalorder %s204, %s218
      %p220 = scmp.eq.s32.totalorder %s24, 0
      %p221 = por %p219, %p220
      %s223 = sadd.s32 %s222, 1
      %p226 = scmp.eq.s32.totalorder %s18, 1
      %p227 = scmp.ne.s32.totalorder %s222, %s224
      %p228 = scmp.eq.s32.totalorder %s18, 0
      %p229 = por %p227, %p228
      %p230 = scmp.ne.s32.totalorder %s222, %s224
      %p231 = scmp.eq.s32.totalorder %s23, 1
      %p232 = por %p230, %p231
      %p233 = scmp.ne.s32.totalorder %s224, %s225
      %p234 = scmp.eq.s32.totalorder %s23, 0
      %p235 = por %p233, %p234
      %p236 = scmp.ne.s32.totalorder %s224, %s225
      %p237 = scmp.eq.s32.totalorder %s24, 1
      %p238 = por %p236, %p237
      %p240 = scmp.ne.s32.totalorder %s225, %s239
      %p241 = scmp.eq.s32.totalorder %s24, 0
      %p242 = por %p240, %p241
      %s244 = sadd.s32 %s243, 1
      %p247 = scmp.eq.s32.totalorder %s18, 1
      %p248 = scmp.ne.s32.totalorder %s243, %s245
      %p249 = scmp.eq.s32.totalorder %s18, 0
      %p250 = por %p248, %p249
      %p251 = scmp.ne.s32.totalorder %s243, %s245
      %p252 = scmp.eq.s32.totalorder %s23, 1
      %p253 = por %p251, %p252
      %p254 = scmp.ne.s32.totalorder %s245, %s246
      %p255 = scmp.eq.s32.totalorder %s23, 0
      %p256 = por %p254, %p255
      %p257 = scmp.ne.s32.totalorder %s245, %s246
      %p258 = scmp.eq.s32.totalorder %s24, 1
      %p259 = por %p257, %p258
      %p261 = scmp.ne.s32.totalorder %s246, %s260
      %p262 = scmp.eq.s32.totalorder %s24, 0
      %p263 = por %p261, %p262
      %s264 = ssub.s32 %s25, %s37
      %s265 = ssub.s32 %s26, %s33
      %s266 = sor.u32 %s264, %s265
      %p267 = scmp.eq.s32.totalorder %s266, 0
      %s269 = sadd.s32 %s268, 1
      %s270 = scalar_select %p267, %s268, %s269
      %p273 = pneg %p267
      %p274 = scmp.eq.s32.totalorder %s18, 1
      %p275 = por %p273, %p274
      %p276 = scmp.ne.s32.totalorder %s268, %s271
      %p277 = scmp.eq.s32.totalorder %s18, 0
      %p278 = por %p276, %p277
      %p279 = scmp.ne.s32.totalorder %s268, %s271
      %p280 = scmp.eq.s32.totalorder %s23, 1
      %p281 = por %p279, %p280
      %p282 = scmp.ne.s32.totalorder %s271, %s272
      %p283 = scmp.eq.s32.totalorder %s23, 0
      %p284 = por %p282, %p283
      %p285 = scmp.ne.s32.totalorder %s271, %s272
      %p286 = scmp.eq.s32.totalorder %s24, 1
      %p287 = por %p285, %p286
      %p289 = scmp.ne.s32.totalorder %s272, %s288
      %p290 = scmp.eq.s32.totalorder %s24, 0
      %p291 = por %p289, %p290
      %p292 = scmp.le.s32.totalorder 1, %s18
      %p293 = scmp.lt.s32.totalorder %s18, 3
      %p294 = pnand %p292, %p293
      %p295 = pneg %p294
      // Predicated region
      $region9: #{tpu_custom_call.1} parent=5 // pred_check
        _
      $region10: #{tpu_custom_call.1} parent=5 // pred_check_branch
        %297 = sbr.rel (%p294) target = $region12
      $region11: #{tpu_custom_call.1} parent=5 // pred_region
        %s298 = ssub.s32 %s18, 1
        // Predicated region
        $region13: #{tpu_custom_call.1} parent=11 // pred_check
          %p299 = pneg %p151
        $region14: #{tpu_custom_call.1} parent=11 // pred_check_branch
          %301 = sbr.rel (%p299) target = $region16
        $region15: #{tpu_custom_call.1} parent=11 // pred_region
          _
        $region16: #{tpu_custom_call.1} parent=11 // pred_fallthru
          _
        // Predicated region
        $region17: #{tpu_custom_call.1} parent=11 // pred_check
          %p302 = pneg %p172
        $region18: #{tpu_custom_call.1} parent=11 // pred_check_branch
          %304 = sbr.rel (%p302) target = $region20
        $region19: #{tpu_custom_call.1} parent=11 // pred_region
          _
        $region20: #{tpu_custom_call.1} parent=11 // pred_fallthru
          _
        // Predicated region
        $region21: #{tpu_custom_call.1} parent=11 // pred_check
          %p305 = pneg %p193
        $region22: #{tpu_custom_call.1} parent=11 // pred_check_branch
          %307 = sbr.rel (%p305) target = $region24
        $region23: #{tpu_custom_call.1} parent=11 // pred_region
          _
        $region24: #{tpu_custom_call.1} parent=11 // pred_fallthru
          _
        // Predicated region
        $region25: #{tpu_custom_call.1} parent=11 // pred_check
          %p308 = pneg %p214
        $region26: #{tpu_custom_call.1} parent=11 // pred_check_branch
          %310 = sbr.rel (%p308) target = $region28
        $region27: #{tpu_custom_call.1} parent=11 // pred_region
          _
        $region28: #{tpu_custom_call.1} parent=11 // pred_fallthru
          _
        // Predicated region
        $region29: #{tpu_custom_call.1} parent=11 // pred_check
          %p311 = pneg %p235
        $region30: #{tpu_custom_call.1} parent=11 // pred_check_branch
          %313 = sbr.rel (%p311) target = $region32
        $region31: #{tpu_custom_call.1} parent=11 // pred_region
          _
        $region32: #{tpu_custom_call.1} parent=11 // pred_fallthru
          _
        // Predicated region
        $region33: #{tpu_custom_call.1} parent=11 // pred_check
          %p314 = pneg %p256
        $region34: #{tpu_custom_call.1} parent=11 // pred_check_branch
          %316 = sbr.rel (%p314) target = $region36
        $region35: #{tpu_custom_call.1} parent=11 // pred_region
          _
        $region36: #{tpu_custom_call.1} parent=11 // pred_fallthru
          _
      $region12: #{tpu_custom_call.1} parent=5 // pred_fallthru
        _
      %p317 = scmp.lt.s32.totalorder %s18, 2
      // Predicated region
      $region37: #{tpu_custom_call.1} parent=5 // pred_check
        %p318 = pneg %p317
      $region38: #{tpu_custom_call.1} parent=5 // pred_check_branch
        %320 = sbr.rel (%p318) target = $region40
      $region39: #{tpu_custom_call.1} parent=5 // pred_region
        // Predicated region
        $region41: #{tpu_custom_call.1} parent=39 // pred_check
          %p321 = pneg %p60
        $region42: #{tpu_custom_call.1} parent=39 // pred_check_branch
          %323 = sbr.rel (%p321) target = $region44
        $region43: #{tpu_custom_call.1} parent=39 // pred_region
          %s324 = smul.u32 %s26, 2
          %s325 = ssub.s32 %s324, 1
          %p326 = scmp.gt.s32.totalorder %s325, 0
          %s327 = scalar_select %p326, %s325, 0
          %p328 = scmp.lt.s32.totalorder %s25, 1
          %s329 = scalar_select %p328, %s25, 1
          %p330 = scmp.lt.s32.totalorder %s327, 1
          %s331 = scalar_select %p330, %s327, 1
          %s332 = smul.addr %s329, 2
          %s333 = sadd.s32 %s331, %s332
          %s334 = smul.addr %s333, 4
          %s335 = scalar_lea.vmem %s0, %s334
          %s336 = smul.u32 %s26, 2
          %s337 = ssub.s32 %s336, 1
          %p338 = scmp.gt.s32.totalorder %s337, 0
          %s339 = scalar_select %p338, %s337, 0
        $region44: #{tpu_custom_call.1} parent=39 // pred_fallthru
          _
        // Predicated region
        $region45: #{tpu_custom_call.1} parent=39 // pred_check
          %p340 = pneg %p88
        $region46: #{tpu_custom_call.1} parent=39 // pred_check_branch
          %342 = sbr.rel (%p340) target = $region48
        $region47: #{tpu_custom_call.1} parent=39 // pred_region
          %s343 = smul.u32 2, %s26
          %p344 = scmp.lt.s32.totalorder %s25, 1
          %s345 = scalar_select %p344, %s25, 1
          %p346 = scmp.lt.s32.totalorder %s343, 1
          %s347 = scalar_select %p346, %s343, 1
          %s348 = smul.addr %s345, 2
          %s349 = sadd.s32 %s347, %s348
          %s350 = smul.addr %s349, 4
          %s351 = scalar_lea.vmem %s1, %s350
          %s352 = smul.u32 2, %s26
        $region48: #{tpu_custom_call.1} parent=39 // pred_fallthru
          _
        // Predicated region
        $region49: #{tpu_custom_call.1} parent=39 // pred_check
          %p353 = pneg %p124
        $region50: #{tpu_custom_call.1} parent=39 // pred_check_branch
          %355 = sbr.rel (%p353) target = $region52
        $region51: #{tpu_custom_call.1} parent=39 // pred_region
          %s356 = sadd.s32 %s26, 1
          %s357 = smul.u32 %s356, 2
          %p358 = scmp.lt.s32.totalorder %s357, 1
          %s359 = scalar_select %p358, %s357, 1
          %p360 = scmp.lt.s32.totalorder %s25, 1
          %s361 = scalar_select %p360, %s25, 1
          %p362 = scmp.lt.s32.totalorder %s359, 1
          %s363 = scalar_select %p362, %s359, 1
          %s364 = smul.addr %s361, 2
          %s365 = sadd.s32 %s363, %s364
          %s366 = smul.addr %s365, 4
          %s367 = scalar_lea.vmem %s2, %s366
          %s368 = sadd.s32 %s26, 1
          %s369 = smul.u32 %s368, 2
          %p370 = scmp.lt.s32.totalorder %s369, 1
          %s371 = scalar_select %p370, %s369, 1
        $region52: #{tpu_custom_call.1} parent=39 // pred_fallthru
          _
      $region40: #{tpu_custom_call.1} parent=5 // pred_fallthru
        _
      %p372 = scmp.le.s32.totalorder 1, %s18
      %p373 = scmp.lt.s32.totalorder %s18, 3
      %p374 = pnand %p372, %p373
      %p375 = pneg %p374
      // Predicated region
      $region53: #{tpu_custom_call.1} parent=5 // pred_check
        _
      $region54: #{tpu_custom_call.1} parent=5 // pred_check_branch
        %377 = sbr.rel (%p374) target = $region56
      $region55: #{tpu_custom_call.1} parent=5 // pred_region
        %s378 = ssub.s32 %s18, 1
        %s379 = smul.u32 %s28, 2
        %s380 = ssub.s32 %s379, 1
        %p381 = scmp.gt.s32.totalorder %s380, 0
        %s382 = scalar_select %p381, %s380, 0
        %p383 = scmp.lt.s32.totalorder %s27, 1
        %s384 = scalar_select %p383, %s27, 1
        %p385 = scmp.lt.s32.totalorder %s382, 1
        %s386 = scalar_select %p385, %s382, 1
        %s387 = smul.addr %s384, 2
        %s388 = sadd.s32 %s386, %s387
        %s389 = smul.addr %s388, 4
        %s390 = scalar_lea.vmem %s0, %s389
        %p391 = pneg %p66
        %p392 = pneg %p63
        %s393 = smul.u32 2, %s28
        %p394 = scmp.lt.s32.totalorder %s27, 1
        %s395 = scalar_select %p394, %s27, 1
        %p396 = scmp.lt.s32.totalorder %s393, 1
        %s397 = scalar_select %p396, %s393, 1
        %s398 = smul.addr %s395, 2
        %s399 = sadd.s32 %s397, %s398
        %s400 = smul.addr %s399, 4
        %s401 = scalar_lea.vmem %s1, %s400
        %p402 = pneg %p94
        %p403 = pneg %p91
        %s404 = sadd.s32 %s28, 1
        %s405 = smul.u32 %s404, 2
        %p406 = scmp.lt.s32.totalorder %s405, 1
        %s407 = scalar_select %p406, %s405, 1
        %p408 = scmp.lt.s32.totalorder %s27, 1
        %s409 = scalar_select %p408, %s27, 1
        %p410 = scmp.lt.s32.totalorder %s407, 1
        %s411 = scalar_select %p410, %s407, 1
        %s412 = smul.addr %s409, 2
        %s413 = sadd.s32 %s411, %s412
        %s414 = smul.addr %s413, 4
        %s415 = scalar_lea.vmem %s2, %s414
        %p416 = pneg %p130
        %p417 = pneg %p127
        %p418 = pneg %p151
        %p419 = pneg %p148
        %p420 = pneg %p172
        %p421 = pneg %p169
        %p422 = pneg %p193
        %p423 = pneg %p190
        %p424 = pneg %p214
        %p425 = pneg %p211
        %p426 = pneg %p235
        %p427 = pneg %p232
        %p428 = pneg %p256
        %p429 = pneg %p253
        %p430 = pneg %p284
        %p431 = pneg %p281
        %s432 = sand.u32 %s271, 1
        %s433 = scalar_lea.sflag [#allocation3], %s432
        %s434 = sand.u32 %s271, 1
        %s435 = smul.addr %s434, 16
        %s436 = scalar_lea.vmem [#allocation2], %s435
        %s437 = smul.u32 %s28, 2
        %s438 = ssub.s32 %s437, 1
        %p439 = scmp.gt.s32.totalorder %s438, 0
        %s440 = scalar_select %p439, %s438, 0
        %p441 = scmp.lt.s32.totalorder %s27, 1
        %s442 = scalar_select %p441, %s27, 1
        %p443 = scmp.lt.s32.totalorder %s440, 1
        %s444 = scalar_select %p443, %s440, 1
        %s445 = smul.addr %s442, 2
        %s446 = sadd.s32 %s444, %s445
        %s447 = smul.addr %s446, 4
        %s448 = scalar_lea.vmem %s0, %s447
        %s449 = smul.u32 %s28, 2
        %s450 = ssub.s32 %s449, 1
        %p451 = scmp.gt.s32.totalorder %s450, 0
        %s452 = scalar_select %p451, %s450, 0
        %s453 = smul.u32 2, %s28
        %p454 = scmp.lt.s32.totalorder %s27, 1
        %s455 = scalar_select %p454, %s27, 1
        %p456 = scmp.lt.s32.totalorder %s453, 1
        %s457 = scalar_select %p456, %s453, 1
        %s458 = smul.addr %s455, 2
        %s459 = sadd.s32 %s457, %s458
        %s460 = smul.addr %s459, 4
        %s461 = scalar_lea.vmem %s1, %s460
        %s462 = smul.u32 2, %s28
        %s463 = sadd.s32 %s28, 1
        %s464 = smul.u32 %s463, 2
        %p465 = scmp.lt.s32.totalorder %s464, 1
        %s466 = scalar_select %p465, %s464, 1
        %p467 = scmp.lt.s32.totalorder %s27, 1
        %s468 = scalar_select %p467, %s27, 1
        %p469 = scmp.lt.s32.totalorder %s466, 1
        %s470 = scalar_select %p469, %s466, 1
        %s471 = smul.addr %s468, 2
        %s472 = sadd.s32 %s470, %s471
        %s473 = smul.addr %s472, 4
        %s474 = scalar_lea.vmem %s2, %s473
        %s475 = sadd.s32 %s28, 1
        %s476 = smul.u32 %s475, 2
        %p477 = scmp.lt.s32.totalorder %s476, 1
        %s478 = scalar_select %p477, %s476, 1
        %s479 = smul.u32 2, %s28
        %v480 = vld [vmem:[%s448] sm:$0xf]
        %v481 = vld [vmem:[%s461] sm:$0xff]
        %v482 = vld [vmem:[%s474] sm:$0xf]
        %v484 = vcombine.high %v481, %v481
        %v486 = vld [vmem:[%s3] sm:$0xff]
        %v487 = vld [vmem:[%s3 + $0x8] sm:$0xff]
        %v488 = vld [vmem:[%s3 + $0x10] sm:$0xff]
        %490 = vset.pattern.permute.xlu0 0
        %491 = vperm.xlu0 %490, %v486
        %v492 = vpop.permute.xlu0 %491
        %495 = vset.pattern.permute.xlu0 0
        %496 = vperm.xlu0 %495, %v487
        %v497 = vpop.permute.xlu0 %496
        %500 = vset.pattern.permute.xlu0 0
        %501 = vperm.xlu0 %500, %v488
        %v502 = vpop.permute.xlu0 %501
        %v504 = vlaneseq
        %v505 = vshrl.u32 %v504, 7
        %v506 = vsub.s32 0, %v505
        %v507 = vrot.slane %v480, %v506
        %v508 = vlaneseq
        %v509 = vshrl.u32 %v508, 7
        %v510 = vsub.s32 0, %v509
        %v511 = vrot.slane %v481, %v510
        %v512 = vlaneseq
        %v513 = vshrl.u32 %v512, 7
        %v514 = vsub.s32 0, %v513
        %v515 = vrot.slane %v484, %v514
        %v516 = vlaneseq
        %v517 = vshrl.u32 %v516, 7
        %v518 = vsub.s32 0, %v517
        %v519 = vrot.slane %v482, %v518
        %v520 = vmul.f32 %v492, %v507
        %v521 = vmul.f32 %v492, %v511
        %v522 = vmul.f32 %v492, %v515
        %v523 = vmul.f32 %v492, %v519
        %v524 = vmul.f32 %v497, %v507
        %v525 = vmul.f32 %v497, %v511
        %v526 = vmul.f32 %v497, %v515
        %v527 = vmul.f32 %v497, %v519
        %v528 = vmul.f32 %v502, %v507
        %v529 = vmul.f32 %v502, %v511
        %v530 = vmul.f32 %v502, %v515
        %v531 = vmul.f32 %v502, %v519
        %532 = vset.pattern.permute.xlu0 1
        %533 = vperm.xlu0 %532, %v486
        %v534 = vpop.permute.xlu0 %533
        %536 = vset.pattern.permute.xlu0 1
        %537 = vperm.xlu0 %536, %v487
        %v538 = vpop.permute.xlu0 %537
        %540 = vset.pattern.permute.xlu0 1
        %541 = vperm.xlu0 %540, %v488
        %v542 = vpop.permute.xlu0 %541
        %v544 = vlaneseq
        %v545 = vshrl.u32 %v544, 7
        %v546 = vsub.s32 1, %v545
        %v547 = vrot.slane %v480, %v546
        %v548 = vlaneseq
        %v549 = vshrl.u32 %v548, 7
        %v550 = vsub.s32 1, %v549
        %v551 = vrot.slane %v481, %v550
        %v552 = vlaneseq
        %v553 = vshrl.u32 %v552, 7
        %v554 = vsub.s32 1, %v553
        %v555 = vrot.slane %v484, %v554
        %v556 = vlaneseq
        %v557 = vshrl.u32 %v556, 7
        %v558 = vsub.s32 1, %v557
        %v559 = vrot.slane %v482, %v558
        %v560 = vmul.f32 %v534, %v547
        %v561 = vmul.f32 %v534, %v551
        %v562 = vmul.f32 %v534, %v555
        %v563 = vmul.f32 %v534, %v559
        %v564 = vmul.f32 %v538, %v547
        %v565 = vmul.f32 %v538, %v551
        %v566 = vmul.f32 %v538, %v555
        %v567 = vmul.f32 %v538, %v559
        %v568 = vmul.f32 %v542, %v547
        %v569 = vmul.f32 %v542, %v551
        %v570 = vmul.f32 %v542, %v555
        %v571 = vmul.f32 %v542, %v559
        %v572 = vadd.f32 %v520, %v560
        %v573 = vadd.f32 %v521, %v561
        %v574 = vadd.f32 %v522, %v562
        %v575 = vadd.f32 %v523, %v563
        %v576 = vadd.f32 %v524, %v564
        %v577 = vadd.f32 %v525, %v565
        %v578 = vadd.f32 %v526, %v566
        %v579 = vadd.f32 %v527, %v567
        %v580 = vadd.f32 %v528, %v568
        %v581 = vadd.f32 %v529, %v569
        %v582 = vadd.f32 %v530, %v570
        %v583 = vadd.f32 %v531, %v571
        %584 = vset.pattern.permute.xlu0 2
        %585 = vperm.xlu0 %584, %v486
        %v586 = vpop.permute.xlu0 %585
        %588 = vset.pattern.permute.xlu0 2
        %589 = vperm.xlu0 %588, %v487
        %v590 = vpop.permute.xlu0 %589
        %592 = vset.pattern.permute.xlu0 2
        %593 = vperm.xlu0 %592, %v488
        %v594 = vpop.permute.xlu0 %593
        %v596 = vlaneseq
        %v597 = vshrl.u32 %v596, 7
        %v598 = vsub.s32 2, %v597
        %v599 = vrot.slane %v480, %v598
        %v600 = vlaneseq
        %v601 = vshrl.u32 %v600, 7
        %v602 = vsub.s32 2, %v601
        %v603 = vrot.slane %v481, %v602
        %v604 = vlaneseq
        %v605 = vshrl.u32 %v604, 7
        %v606 = vsub.s32 2, %v605
        %v607 = vrot.slane %v484, %v606
        %v608 = vlaneseq
        %v609 = vshrl.u32 %v608, 7
        %v610 = vsub.s32 2, %v609
        %v611 = vrot.slane %v482, %v610
        %v612 = vmul.f32 %v586, %v599
        %v613 = vmul.f32 %v586, %v603
        %v614 = vmul.f32 %v586, %v607
        %v615 = vmul.f32 %v586, %v611
        %v616 = vmul.f32 %v590, %v599
        %v617 = vmul.f32 %v590, %v603
        %v618 = vmul.f32 %v590, %v607
        %v619 = vmul.f32 %v590, %v611
        %v620 = vmul.f32 %v594, %v599
        %v621 = vmul.f32 %v594, %v603
        %v622 = vmul.f32 %v594, %v607
        %v623 = vmul.f32 %v594, %v611
        %v624 = vadd.f32 %v572, %v612
        %v625 = vadd.f32 %v573, %v613
        %v626 = vadd.f32 %v574, %v614
        %v627 = vadd.f32 %v575, %v615
        %v628 = vadd.f32 %v576, %v616
        %v629 = vadd.f32 %v577, %v617
        %v630 = vadd.f32 %v578, %v618
        %v631 = vadd.f32 %v579, %v619
        %v632 = vadd.f32 %v580, %v620
        %v633 = vadd.f32 %v581, %v621
        %v634 = vadd.f32 %v582, %v622
        %v635 = vadd.f32 %v583, %v623
        %636 = vset.pattern.permute.xlu0 3
        %637 = vperm.xlu0 %636, %v486
        %v638 = vpop.permute.xlu0 %637
        %640 = vset.pattern.permute.xlu0 3
        %641 = vperm.xlu0 %640, %v487
        %v642 = vpop.permute.xlu0 %641
        %644 = vset.pattern.permute.xlu0 3
        %645 = vperm.xlu0 %644, %v488
        %v646 = vpop.permute.xlu0 %645
        %v648 = vlaneseq
        %v649 = vshrl.u32 %v648, 7
        %v650 = vsub.s32 3, %v649
        %v651 = vrot.slane %v480, %v650
        %v652 = vlaneseq
        %v653 = vshrl.u32 %v652, 7
        %v654 = vsub.s32 3, %v653
        %v655 = vrot.slane %v481, %v654
        %v656 = vlaneseq
        %v657 = vshrl.u32 %v656, 7
        %v658 = vsub.s32 3, %v657
        %v659 = vrot.slane %v484, %v658
        %v660 = vlaneseq
        %v661 = vshrl.u32 %v660, 7
        %v662 = vsub.s32 3, %v661
        %v663 = vrot.slane %v482, %v662
        %v664 = vmul.f32 %v638, %v651
        %v665 = vmul.f32 %v638, %v655
        %v666 = vmul.f32 %v638, %v659
        %v667 = vmul.f32 %v638, %v663
        %v668 = vmul.f32 %v642, %v651
        %v669 = vmul.f32 %v642, %v655
        %v670 = vmul.f32 %v642, %v659
        %v671 = vmul.f32 %v642, %v663
        %v672 = vmul.f32 %v646, %v651
        %v673 = vmul.f32 %v646, %v655
        %v674 = vmul.f32 %v646, %v659
        %v675 = vmul.f32 %v646, %v663
        %v676 = vadd.f32 %v624, %v664
        %v677 = vadd.f32 %v625, %v665
        %v678 = vadd.f32 %v626, %v666
        %v679 = vadd.f32 %v627, %v667
        %v680 = vadd.f32 %v628, %v668
        %v681 = vadd.f32 %v629, %v669
        %v682 = vadd.f32 %v630, %v670
        %v683 = vadd.f32 %v631, %v671
        %v684 = vadd.f32 %v632, %v672
        %v685 = vadd.f32 %v633, %v673
        %v686 = vadd.f32 %v634, %v674
        %v687 = vadd.f32 %v635, %v675
        %v688 = vld [vmem:[%s4] sm:$0xff]
        %v689 = vld [vmem:[%s4 + $0x8] sm:$0xff]
        %v690 = vld [vmem:[%s4 + $0x10] sm:$0xff]
        %692 = vset.pattern.permute.xlu0 0
        %693 = vperm.xlu0 %692, %v688
        %v694 = vpop.permute.xlu0 %693
        %697 = vset.pattern.permute.xlu0 0
        %698 = vperm.xlu0 %697, %v689
        %v699 = vpop.permute.xlu0 %698
        %702 = vset.pattern.permute.xlu0 0
        %703 = vperm.xlu0 %702, %v690
        %v704 = vpop.permute.xlu0 %703
        %v706 = vadd.f32 %v676, %v694
        %v707 = vadd.f32 %v677, %v694
        %v708 = vadd.f32 %v678, %v694
        %v709 = vadd.f32 %v679, %v694
        %v710 = vadd.f32 %v680, %v699
        %v711 = vadd.f32 %v681, %v699
        %v712 = vadd.f32 %v682, %v699
        %v713 = vadd.f32 %v683, %v699
        %v714 = vadd.f32 %v684, %v704
        %v715 = vadd.f32 %v685, %v704
        %v716 = vadd.f32 %v686, %v704
        %v717 = vadd.f32 %v687, %v704
        %v718 = vmax.f32 %v706, 0.0
        %v719 = vmax.f32 %v707, 0.0
        %v720 = vmax.f32 %v708, 0.0
        %v721 = vmax.f32 %v709, 0.0
        %v722 = vmax.f32 %v710, 0.0
        %v723 = vmax.f32 %v711, 0.0
        %v724 = vmax.f32 %v712, 0.0
        %v725 = vmax.f32 %v713, 0.0
        %v726 = vmax.f32 %v714, 0.0
        %v727 = vmax.f32 %v715, 0.0
        %v728 = vmax.f32 %v716, 0.0
        %v729 = vmax.f32 %v717, 0.0
        %v730 = vmin.f32 %v718, 6.0
        %v731 = vmin.f32 %v719, 6.0
        %v732 = vmin.f32 %v720, 6.0
        %v733 = vmin.f32 %v721, 6.0
        %v734 = vmin.f32 %v722, 6.0
        %v735 = vmin.f32 %v723, 6.0
        %v736 = vmin.f32 %v724, 6.0
        %v737 = vmin.f32 %v725, 6.0
        %v738 = vmin.f32 %v726, 6.0
        %v739 = vmin.f32 %v727, 6.0
        %v740 = vmin.f32 %v728, 6.0
        %v741 = vmin.f32 %v729, 6.0
        %v742 = vlaneseq
        %v743 = vand.u32 %v742, 127
        %v744 = vadd.s32 %v743, 128
        %v745 = vadd.s32 %v743, 256
        %v746 = vadd.s32 %v743, 384
        %vm747 = vcmp.ge.s32.totalorder %v743, 128
        %vm748 = vcmp.ge.s32.totalorder %v744, 128
        %vm749 = vcmp.ge.s32.totalorder %v745, 128
        %vm750 = vcmp.ge.s32.totalorder %v746, 128
        %vm751 = vcmp.lt.s32.totalorder %v743, 384
        %vm752 = vcmp.lt.s32.totalorder %v744, 384
        %vm753 = vcmp.lt.s32.totalorder %v745, 384
        %vm754 = vcmp.lt.s32.totalorder %v746, 384
        %vm755 = vmand %vm747, %vm751
        %vm756 = vmand %vm748, %vm752
        %vm757 = vmand %vm749, %vm753
        %vm758 = vmand %vm750, %vm754
        %vm759 = vcmp.lt.s32.totalorder %v743, 128
        %vm760 = vcmp.lt.s32.totalorder %v744, 128
        %vm761 = vcmp.lt.s32.totalorder %v745, 128
        %vm762 = vcmp.lt.s32.totalorder %v746, 128
        %p763 = scmp.gt.s32.totalorder %s28, 0
        %s764 = scalar_select %p763, 1, 0
        %v765 = vstv %s764
        %vm766 = vcmp.eq.s32.totalorder %v765, 1
        %vm767 = vmand %vm759, %vm766
        %vm768 = vmand %vm760, %vm766
        %vm769 = vmand %vm761, %vm766
        %vm770 = vmand %vm762, %vm766
        %vm771 = vmor %vm755, %vm767
        %vm772 = vmor %vm756, %vm768
        %vm773 = vmor %vm757, %vm769
        %vm774 = vmor %vm758, %vm770
        %vm775 = vcmp.ge.s32.totalorder %v743, 384
        %vm776 = vcmp.ge.s32.totalorder %v744, 384
        %vm777 = vcmp.ge.s32.totalorder %v745, 384
        %vm778 = vcmp.ge.s32.totalorder %v746, 384
        %p779 = scmp.lt.s32.totalorder %s28, 0
        %s780 = scalar_select %p779, 1, 0
        %v781 = vstv %s780
        %vm782 = vcmp.eq.s32.totalorder %v781, 1
        %vm783 = vmand %vm775, %vm782
        %vm784 = vmand %vm776, %vm782
        %vm785 = vmand %vm777, %vm782
        %vm786 = vmand %vm778, %vm782
        %vm787 = vmor %vm771, %vm783
        %vm788 = vmor %vm772, %vm784
        %vm789 = vmor %vm773, %vm785
        %vm790 = vmor %vm774, %vm786
        %v791 = vsel %vm787, 1, 0
        %v792 = vsel %vm788, 1, 0
        %v793 = vsel %vm789, 1, 0
        %v794 = vsel %vm790, 1, 0
        %vm795 = vcmp.eq.s32.totalorder %v791, 1
        %vm796 = vcmp.eq.s32.totalorder %v792, 1
        %vm797 = vcmp.eq.s32.totalorder %v793, 1
        %vm798 = vcmp.eq.s32.totalorder %v794, 1
        %v799 = vsel %vm795, %v730, 0.0
        %v800 = vsel %vm796, %v731, 0.0
        %v801 = vsel %vm797, %v732, 0.0
        %v802 = vsel %vm798, %v733, 0.0
        %v803 = vsel %vm795, %v734, 0.0
        %v804 = vsel %vm796, %v735, 0.0
        %v805 = vsel %vm797, %v736, 0.0
        %v806 = vsel %vm798, %v737, 0.0
        %v807 = vsel %vm795, %v738, 0.0
        %v808 = vsel %vm796, %v739, 0.0
        %v809 = vsel %vm797, %v740, 0.0
        %v810 = vsel %vm798, %v741, 0.0
        %v811 = vld [vmem:[%s5] sm:$0xff]
        %v812 = vld [vmem:[%s5 + $0x8] sm:$0xff]
        %v813 = vld [vmem:[%s5 + $0x10] sm:$0xff]
        %vm814 = vcmp.lt.s32.totalorder %v743, 0
        %v815 = vsub.s32 0, %v743
        %v816 = vsel %vm814, %v815, %v743
        %v817 = vshrl.u32 %v816, 4
        %v818 = vand.u32 %v816, 15
        %v819 = vsub.s32 0, %v818
        %v820 = vsel %vm814, %v819, %v818
        %vm821 = vcmp.lt.s32.totalorder %v744, 0
        %v822 = vsub.s32 0, %v744
        %v823 = vsel %vm821, %v822, %v744
        %v824 = vshrl.u32 %v823, 4
        %v825 = vand.u32 %v823, 15
        %v826 = vsub.s32 0, %v825
        %v827 = vsel %vm821, %v826, %v825
        %vm828 = vcmp.ne.s32.totalorder %v820, 0
        %vm829 = vcmp.ne.s32.totalorder %v827, 0
        %vm830 = vcmp.lt.s32.totalorder %v820, 0
        %vm831 = vcmp.lt.s32.totalorder %v827, 0
        %vm832 = vmand %vm830, %vm828
        %vm833 = vmand %vm831, %vm829
        %v834 = vadd.s32 %v820, 16
        %v835 = vadd.s32 %v827, 16
        %v836 = vsel %vm832, %v834, %v820
        %v837 = vsel %vm833, %v835, %v827
        %v838 = vadd.s32 %v836, 4294967295
        %v839 = vadd.s32 %v837, 4294967295
        %vm840 = vcmp.ge.s32.totalorder %v838, 0
        %vm841 = vcmp.ge.s32.totalorder %v839, 0
        %vm842 = vcmp.lt.s32.totalorder %v838, 16
        %vm843 = vcmp.lt.s32.totalorder %v839, 16
        %vm844 = vmand %vm840, %vm842
        %vm845 = vmand %vm841, %vm843
        %v846 = vadd.s32 %v836, 1
        %v847 = vadd.s32 %v837, 1
        %vm848 = vcmp.ge.s32.totalorder %v846, 0
        %vm849 = vcmp.ge.s32.totalorder %v847, 0
        %vm850 = vcmp.lt.s32.totalorder %v846, 16
        %vm851 = vcmp.lt.s32.totalorder %v847, 16
        %vm852 = vmand %vm848, %vm850
        %vm853 = vmand %vm849, %vm851
        %854 = vrot.lane.b32.xlu0 %v799, 17
        %v855 = vpop.permute.xlu0 %854
        %856 = vrot.lane.b32.xlu0 %v803, 17
        %v857 = vpop.permute.xlu0 %856
        %858 = vrot.lane.b32.xlu0 %v807, 17
        %v859 = vpop.permute.xlu0 %858
        %860 = vrot.lane.b32.xlu0 %v800, 17
        %v861 = vpop.permute.xlu0 %860
        %862 = vrot.lane.b32.xlu0 %v804, 17
        %v863 = vpop.permute.xlu0 %862
        %864 = vrot.lane.b32.xlu0 %v808, 17
        %v865 = vpop.permute.xlu0 %864
        %866 = vrot.lane.b32.xlu0 %v801, 17
        %v867 = vpop.permute.xlu0 %866
        %868 = vrot.lane.b32.xlu0 %v805, 17
        %v869 = vpop.permute.xlu0 %868
        %870 = vrot.lane.b32.xlu0 %v809, 17
        %v871 = vpop.permute.xlu0 %870
        %vm872 = vcmp.lt.s32.totalorder %v743, 17
        %v873 = vsel %vm872, %v861, %v867
        %v874 = vsel %vm872, %v863, %v869
        %v875 = vsel %vm872, %v865, %v871
        %v876 = vsel %vm872, %v855, %v861
        %v877 = vsel %vm872, %v857, %v863
        %v878 = vsel %vm872, %v859, %v865
        %880 = vset.pattern.permute.xlu0 0
        %881 = vperm.xlu0 %880, %v811
        %v882 = vpop.permute.xlu0 %881
        %885 = vset.pattern.permute.xlu0 0
        %886 = vperm.xlu0 %885, %v812
        %v887 = vpop.permute.xlu0 %886
        %890 = vset.pattern.permute.xlu0 0
        %891 = vperm.xlu0 %890, %v813
        %v892 = vpop.permute.xlu0 %891
        %v894 = vmul.f32 %v876, %v882
        %v895 = vmul.f32 %v873, %v882
        %v896 = vmul.f32 %v877, %v887
        %v897 = vmul.f32 %v874, %v887
        %v898 = vmul.f32 %v878, %v892
        %v899 = vmul.f32 %v875, %v892
        %v900 = vsel %vm844, 1, 0
        %v901 = vsel %vm845, 1, 0
        %vm902 = vcmp.eq.s32.totalorder %v900, 1
        %vm903 = vcmp.eq.s32.totalorder %v901, 1
        %v904 = vsel %vm902, %v894, 0.0
        %v905 = vsel %vm903, %v895, 0.0
        %v906 = vsel %vm902, %v896, 0.0
        %v907 = vsel %vm903, %v897, 0.0
        %v908 = vsel %vm902, %v898, 0.0
        %v909 = vsel %vm903, %v899, 0.0
        %v910 = vadd.f32 %v904, 0.0
        %v911 = vadd.f32 %v905, 0.0
        %v912 = vadd.f32 %v906, 0.0
        %v913 = vadd.f32 %v907, 0.0
        %v914 = vadd.f32 %v908, 0.0
        %v915 = vadd.f32 %v909, 0.0
        %916 = vrot.lane.b32.xlu0 %v799, 16
        %v917 = vpop.permute.xlu0 %916
        %918 = vrot.lane.b32.xlu0 %v803, 16
        %v919 = vpop.permute.xlu0 %918
        %920 = vrot.lane.b32.xlu0 %v807, 16
        %v921 = vpop.permute.xlu0 %920
        %922 = vrot.lane.b32.xlu0 %v800, 16
        %v923 = vpop.permute.xlu0 %922
        %924 = vrot.lane.b32.xlu0 %v804, 16
        %v925 = vpop.permute.xlu0 %924
        %926 = vrot.lane.b32.xlu0 %v808, 16
        %v927 = vpop.permute.xlu0 %926
        %928 = vrot.lane.b32.xlu0 %v801, 16
        %v929 = vpop.permute.xlu0 %928
        %930 = vrot.lane.b32.xlu0 %v805, 16
        %v931 = vpop.permute.xlu0 %930
        %932 = vrot.lane.b32.xlu0 %v809, 16
        %v933 = vpop.permute.xlu0 %932
        %vm934 = vcmp.lt.s32.totalorder %v743, 16
        %v935 = vsel %vm934, %v923, %v929
        %v936 = vsel %vm934, %v925, %v931
        %v937 = vsel %vm934, %v927, %v933
        %v938 = vsel %vm934, %v917, %v923
        %v939 = vsel %vm934, %v919, %v925
        %v940 = vsel %vm934, %v921, %v927
        %941 = vset.pattern.permute.xlu0 1
        %942 = vperm.xlu0 %941, %v811
        %v943 = vpop.permute.xlu0 %942
        %945 = vset.pattern.permute.xlu0 1
        %946 = vperm.xlu0 %945, %v812
        %v947 = vpop.permute.xlu0 %946
        %949 = vset.pattern.permute.xlu0 1
        %950 = vperm.xlu0 %949, %v813
        %v951 = vpop.permute.xlu0 %950
        %v953 = vmul.f32 %v938, %v943
        %v954 = vmul.f32 %v935, %v943
        %v955 = vmul.f32 %v939, %v947
        %v956 = vmul.f32 %v936, %v947
        %v957 = vmul.f32 %v940, %v951
        %v958 = vmul.f32 %v937, %v951
        %v959 = vadd.f32 %v910, %v953
        %v960 = vadd.f32 %v911, %v954
        %v961 = vadd.f32 %v912, %v955
        %v962 = vadd.f32 %v913, %v956
        %v963 = vadd.f32 %v914, %v957
        %v964 = vadd.f32 %v915, %v958
        %965 = vrot.lane.b32.xlu0 %v799, 15
        %v966 = vpop.permute.xlu0 %965
        %967 = vrot.lane.b32.xlu0 %v803, 15
        %v968 = vpop.permute.xlu0 %967
        %969 = vrot.lane.b32.xlu0 %v807, 15
        %v970 = vpop.permute.xlu0 %969
        %971 = vrot.lane.b32.xlu0 %v800, 15
        %v972 = vpop.permute.xlu0 %971
        %973 = vrot.lane.b32.xlu0 %v804, 15
        %v974 = vpop.permute.xlu0 %973
        %975 = vrot.lane.b32.xlu0 %v808, 15
        %v976 = vpop.permute.xlu0 %975
        %977 = vrot.lane.b32.xlu0 %v801, 15
        %v978 = vpop.permute.xlu0 %977
        %979 = vrot.lane.b32.xlu0 %v805, 15
        %v980 = vpop.permute.xlu0 %979
        %981 = vrot.lane.b32.xlu0 %v809, 15
        %v982 = vpop.permute.xlu0 %981
        %vm983 = vcmp.lt.s32.totalorder %v743, 15
        %v984 = vsel %vm983, %v972, %v978
        %v985 = vsel %vm983, %v974, %v980
        %v986 = vsel %vm983, %v976, %v982
        %v987 = vsel %vm983, %v966, %v972
        %v988 = vsel %vm983, %v968, %v974
        %v989 = vsel %vm983, %v970, %v976
        %990 = vset.pattern.permute.xlu0 2
        %991 = vperm.xlu0 %990, %v811
        %v992 = vpop.permute.xlu0 %991
        %994 = vset.pattern.permute.xlu0 2
        %995 = vperm.xlu0 %994, %v812
        %v996 = vpop.permute.xlu0 %995
        %998 = vset.pattern.permute.xlu0 2
        %999 = vperm.xlu0 %998, %v813
        %v1000 = vpop.permute.xlu0 %999
        %v1002 = vmul.f32 %v987, %v992
        %v1003 = vmul.f32 %v984, %v992
        %v1004 = vmul.f32 %v988, %v996
        %v1005 = vmul.f32 %v985, %v996
        %v1006 = vmul.f32 %v989, %v1000
        %v1007 = vmul.f32 %v986, %v1000
        %v1008 = vsel %vm852, 1, 0
        %v1009 = vsel %vm853, 1, 0
        %vm1010 = vcmp.eq.s32.totalorder %v1008, 1
        %vm1011 = vcmp.eq.s32.totalorder %v1009, 1
        %v1012 = vsel %vm1010, %v1002, 0.0
        %v1013 = vsel %vm1011, %v1003, 0.0
        %v1014 = vsel %vm1010, %v1004, 0.0
        %v1015 = vsel %vm1011, %v1005, 0.0
        %v1016 = vsel %vm1010, %v1006, 0.0
        %v1017 = vsel %vm1011, %v1007, 0.0
        %v1018 = vadd.f32 %v959, %v1012
        %v1019 = vadd.f32 %v960, %v1013
        %v1020 = vadd.f32 %v961, %v1014
        %v1021 = vadd.f32 %v962, %v1015
        %v1022 = vadd.f32 %v963, %v1016
        %v1023 = vadd.f32 %v964, %v1017
        %1024 = vrot.lane.b32.xlu0 %v799, 1
        %v1025 = vpop.permute.xlu0 %1024
        %1026 = vrot.lane.b32.xlu0 %v803, 1
        %v1027 = vpop.permute.xlu0 %1026
        %1028 = vrot.lane.b32.xlu0 %v807, 1
        %v1029 = vpop.permute.xlu0 %1028
        %1030 = vrot.lane.b32.xlu0 %v800, 1
        %v1031 = vpop.permute.xlu0 %1030
        %1032 = vrot.lane.b32.xlu0 %v804, 1
        %v1033 = vpop.permute.xlu0 %1032
        %1034 = vrot.lane.b32.xlu0 %v808, 1
        %v1035 = vpop.permute.xlu0 %1034
        %1036 = vrot.lane.b32.xlu0 %v801, 1
        %v1037 = vpop.permute.xlu0 %1036
        %1038 = vrot.lane.b32.xlu0 %v805, 1
        %v1039 = vpop.permute.xlu0 %1038
        %1040 = vrot.lane.b32.xlu0 %v809, 1
        %v1041 = vpop.permute.xlu0 %1040
        %vm1042 = vcmp.lt.s32.totalorder %v743, 1
        %v1043 = vsel %vm1042, %v1031, %v1037
        %v1044 = vsel %vm1042, %v1033, %v1039
        %v1045 = vsel %vm1042, %v1035, %v1041
        %v1046 = vsel %vm1042, %v1025, %v1031
        %v1047 = vsel %vm1042, %v1027, %v1033
        %v1048 = vsel %vm1042, %v1029, %v1035
        %1049 = vset.pattern.permute.xlu0 3
        %1050 = vperm.xlu0 %1049, %v811
        %v1051 = vpop.permute.xlu0 %1050
        %1053 = vset.pattern.permute.xlu0 3
        %1054 = vperm.xlu0 %1053, %v812
        %v1055 = vpop.permute.xlu0 %1054
        %1057 = vset.pattern.permute.xlu0 3
        %1058 = vperm.xlu0 %1057, %v813
        %v1059 = vpop.permute.xlu0 %1058
        %v1061 = vmul.f32 %v1046, %v1051
        %v1062 = vmul.f32 %v1043, %v1051
        %v1063 = vmul.f32 %v1047, %v1055
        %v1064 = vmul.f32 %v1044, %v1055
        %v1065 = vmul.f32 %v1048, %v1059
        %v1066 = vmul.f32 %v1045, %v1059
        %v1067 = vsel %vm902, %v1061, 0.0
        %v1068 = vsel %vm903, %v1062, 0.0
        %v1069 = vsel %vm902, %v1063, 0.0
        %v1070 = vsel %vm903, %v1064, 0.0
        %v1071 = vsel %vm902, %v1065, 0.0
        %v1072 = vsel %vm903, %v1066, 0.0
        %v1073 = vadd.f32 %v1018, %v1067
        %v1074 = vadd.f32 %v1019, %v1068
        %v1075 = vadd.f32 %v1020, %v1069
        %v1076 = vadd.f32 %v1021, %v1070
        %v1077 = vadd.f32 %v1022, %v1071
        %v1078 = vadd.f32 %v1023, %v1072
        %1079 = vset.pattern.permute.xlu0 4
        %1080 = vperm.xlu0 %1079, %v811
        %v1081 = vpop.permute.xlu0 %1080
        %1083 = vset.pattern.permute.xlu0 4
        %1084 = vperm.xlu0 %1083, %v812
        %v1085 = vpop.permute.xlu0 %1084
        %1087 = vset.pattern.permute.xlu0 4
        %1088 = vperm.xlu0 %1087, %v813
        %v1089 = vpop.permute.xlu0 %1088
        %v1091 = vmul.f32 %v800, %v1081
        %v1092 = vmul.f32 %v801, %v1081
        %v1093 = vmul.f32 %v804, %v1085
        %v1094 = vmul.f32 %v805, %v1085
        %v1095 = vmul.f32 %v808, %v1089
        %v1096 = vmul.f32 %v809, %v1089
        %v1097 = vadd.f32 %v1073, %v1091
        %v1098 = vadd.f32 %v1074, %v1092
        %v1099 = vadd.f32 %v1075, %v1093
        %v1100 = vadd.f32 %v1076, %v1094
        %v1101 = vadd.f32 %v1077, %v1095
        %v1102 = vadd.f32 %v1078, %v1096
        %1103 = vrot.lane.b32.xlu0 %v800, 127
        %v1104 = vpop.permute.xlu0 %1103
        %1105 = vrot.lane.b32.xlu0 %v804, 127
        %v1106 = vpop.permute.xlu0 %1105
        %1107 = vrot.lane.b32.xlu0 %v808, 127
        %v1108 = vpop.permute.xlu0 %1107
        %1109 = vrot.lane.b32.xlu0 %v801, 127
        %v1110 = vpop.permute.xlu0 %1109
        %1111 = vrot.lane.b32.xlu0 %v805, 127
        %v1112 = vpop.permute.xlu0 %1111
        %1113 = vrot.lane.b32.xlu0 %v809, 127
        %v1114 = vpop.permute.xlu0 %1113
        %1115 = vrot.lane.b32.xlu0 %v802, 127
        %v1116 = vpop.permute.xlu0 %1115
        %1117 = vrot.lane.b32.xlu0 %v806, 127
        %v1118 = vpop.permute.xlu0 %1117
        %1119 = vrot.lane.b32.xlu0 %v810, 127
        %v1120 = vpop.permute.xlu0 %1119
        %vm1121 = vcmp.lt.s32.totalorder %v743, 127
        %v1122 = vsel %vm1121, %v1110, %v1116
        %v1123 = vsel %vm1121, %v1112, %v1118
        %v1124 = vsel %vm1121, %v1114, %v1120
        %v1125 = vsel %vm1121, %v1104, %v1110
        %v1126 = vsel %vm1121, %v1106, %v1112
        %v1127 = vsel %vm1121, %v1108, %v1114
        %1128 = vset.pattern.permute.xlu0 5
        %1129 = vperm.xlu0 %1128, %v811
        %v1130 = vpop.permute.xlu0 %1129
        %1132 = vset.pattern.permute.xlu0 5
        %1133 = vperm.xlu0 %1132, %v812
        %v1134 = vpop.permute.xlu0 %1133
        %1136 = vset.pattern.permute.xlu0 5
        %1137 = vperm.xlu0 %1136, %v813
        %v1138 = vpop.permute.xlu0 %1137
        %v1140 = vmul.f32 %v1125, %v1130
        %v1141 = vmul.f32 %v1122, %v1130
        %v1142 = vmul.f32 %v1126, %v1134
        %v1143 = vmul.f32 %v1123, %v1134
        %v1144 = vmul.f32 %v1127, %v1138
        %v1145 = vmul.f32 %v1124, %v1138
        %v1146 = vsel %vm1010, %v1140, 0.0
        %v1147 = vsel %vm1011, %v1141, 0.0
        %v1148 = vsel %vm1010, %v1142, 0.0
        %v1149 = vsel %vm1011, %v1143, 0.0
        %v1150 = vsel %vm1010, %v1144, 0.0
        %v1151 = vsel %vm1011, %v1145, 0.0
        %v1152 = vadd.f32 %v1097, %v1146
        %v1153 = vadd.f32 %v1098, %v1147
        %v1154 = vadd.f32 %v1099, %v1148
        %v1155 = vadd.f32 %v1100, %v1149
        %v1156 = vadd.f32 %v1101, %v1150
        %v1157 = vadd.f32 %v1102, %v1151
        %1158 = vrot.lane.b32.xlu0 %v800, 113
        %v1159 = vpop.permute.xlu0 %1158
        %1160 = vrot.lane.b32.xlu0 %v804, 113
        %v1161 = vpop.permute.xlu0 %1160
        %1162 = vrot.lane.b32.xlu0 %v808, 113
        %v1163 = vpop.permute.xlu0 %1162
        %1164 = vrot.lane.b32.xlu0 %v801, 113
        %v1165 = vpop.permute.xlu0 %1164
        %1166 = vrot.lane.b32.xlu0 %v805, 113
        %v1167 = vpop.permute.xlu0 %1166
        %1168 = vrot.lane.b32.xlu0 %v809, 113
        %v1169 = vpop.permute.xlu0 %1168
        %1170 = vrot.lane.b32.xlu0 %v802, 113
        %v1171 = vpop.permute.xlu0 %1170
        %1172 = vrot.lane.b32.xlu0 %v806, 113
        %v1173 = vpop.permute.xlu0 %1172
        %1174 = vrot.lane.b32.xlu0 %v810, 113
        %v1175 = vpop.permute.xlu0 %1174
        %vm1176 = vcmp.lt.s32.totalorder %v743, 113
        %v1177 = vsel %vm1176, %v1165, %v1171
        %v1178 = vsel %vm1176, %v1167, %v1173
        %v1179 = vsel %vm1176, %v1169, %v1175
        %v1180 = vsel %vm1176, %v1159, %v1165
        %v1181 = vsel %vm1176, %v1161, %v1167
        %v1182 = vsel %vm1176, %v1163, %v1169
        %1183 = vset.pattern.permute.xlu0 6
        %1184 = vperm.xlu0 %1183, %v811
        %v1185 = vpop.permute.xlu0 %1184
        %1187 = vset.pattern.permute.xlu0 6
        %1188 = vperm.xlu0 %1187, %v812
        %v1189 = vpop.permute.xlu0 %1188
        %1191 = vset.pattern.permute.xlu0 6
        %1192 = vperm.xlu0 %1191, %v813
        %v1193 = vpop.permute.xlu0 %1192
        %v1195 = vmul.f32 %v1180, %v1185
        %v1196 = vmul.f32 %v1177, %v1185
        %v1197 = vmul.f32 %v1181, %v1189
        %v1198 = vmul.f32 %v1178, %v1189
        %v1199 = vmul.f32 %v1182, %v1193
        %v1200 = vmul.f32 %v1179, %v1193
        %v1201 = vsel %vm902, %v1195, 0.0
        %v1202 = vsel %vm903, %v1196, 0.0
        %v1203 = vsel %vm902, %v1197, 0.0
        %v1204 = vsel %vm903, %v1198, 0.0
        %v1205 = vsel %vm902, %v1199, 0.0
        %v1206 = vsel %vm903, %v1200, 0.0
        %v1207 = vadd.f32 %v1152, %v1201
        %v1208 = vadd.f32 %v1153, %v1202
        %v1209 = vadd.f32 %v1154, %v1203
        %v1210 = vadd.f32 %v1155, %v1204
        %v1211 = vadd.f32 %v1156, %v1205
        %v1212 = vadd.f32 %v1157, %v1206
        %1213 = vrot.lane.b32.xlu0 %v800, 112
        %v1214 = vpop.permute.xlu0 %1213
        %1215 = vrot.lane.b32.xlu0 %v804, 112
        %v1216 = vpop.permute.xlu0 %1215
        %1217 = vrot.lane.b32.xlu0 %v808, 112
        %v1218 = vpop.permute.xlu0 %1217
        %1219 = vrot.lane.b32.xlu0 %v801, 112
        %v1220 = vpop.permute.xlu0 %1219
        %1221 = vrot.lane.b32.xlu0 %v805, 112
        %v1222 = vpop.permute.xlu0 %1221
        %1223 = vrot.lane.b32.xlu0 %v809, 112
        %v1224 = vpop.permute.xlu0 %1223
        %1225 = vrot.lane.b32.xlu0 %v802, 112
        %v1226 = vpop.permute.xlu0 %1225
        %1227 = vrot.lane.b32.xlu0 %v806, 112
        %v1228 = vpop.permute.xlu0 %1227
        %1229 = vrot.lane.b32.xlu0 %v810, 112
        %v1230 = vpop.permute.xlu0 %1229
        %vm1231 = vcmp.lt.s32.totalorder %v743, 112
        %v1232 = vsel %vm1231, %v1220, %v1226
        %v1233 = vsel %vm1231, %v1222, %v1228
        %v1234 = vsel %vm1231, %v1224, %v1230
        %v1235 = vsel %vm1231, %v1214, %v1220
        %v1236 = vsel %vm1231, %v1216, %v1222
        %v1237 = vsel %vm1231, %v1218, %v1224
        %1238 = vset.pattern.permute.xlu0 7
        %1239 = vperm.xlu0 %1238, %v811
        %v1240 = vpop.permute.xlu0 %1239
        %1242 = vset.pattern.permute.xlu0 7
        %1243 = vperm.xlu0 %1242, %v812
        %v1244 = vpop.permute.xlu0 %1243
        %1246 = vset.pattern.permute.xlu0 7
        %1247 = vperm.xlu0 %1246, %v813
        %v1248 = vpop.permute.xlu0 %1247
        %v1250 = vmul.f32 %v1235, %v1240
        %v1251 = vmul.f32 %v1232, %v1240
        %v1252 = vmul.f32 %v1236, %v1244
        %v1253 = vmul.f32 %v1233, %v1244
        %v1254 = vmul.f32 %v1237, %v1248
        %v1255 = vmul.f32 %v1234, %v1248
        %v1256 = vadd.f32 %v1207, %v1250
        %v1257 = vadd.f32 %v1208, %v1251
        %v1258 = vadd.f32 %v1209, %v1252
        %v1259 = vadd.f32 %v1210, %v1253
        %v1260 = vadd.f32 %v1211, %v1254
        %v1261 = vadd.f32 %v1212, %v1255
        %1262 = vrot.lane.b32.xlu0 %v800, 111
        %v1263 = vpop.permute.xlu0 %1262
        %1264 = vrot.lane.b32.xlu0 %v804, 111
        %v1265 = vpop.permute.xlu0 %1264
        %1266 = vrot.lane.b32.xlu0 %v808, 111
        %v1267 = vpop.permute.xlu0 %1266
        %1268 = vrot.lane.b32.xlu0 %v801, 111
        %v1269 = vpop.permute.xlu0 %1268
        %1270 = vrot.lane.b32.xlu0 %v805, 111
        %v1271 = vpop.permute.xlu0 %1270
        %1272 = vrot.lane.b32.xlu0 %v809, 111
        %v1273 = vpop.permute.xlu0 %1272
        %1274 = vrot.lane.b32.xlu0 %v802, 111
        %v1275 = vpop.permute.xlu0 %1274
        %1276 = vrot.lane.b32.xlu0 %v806, 111
        %v1277 = vpop.permute.xlu0 %1276
        %1278 = vrot.lane.b32.xlu0 %v810, 111
        %v1279 = vpop.permute.xlu0 %1278
        %vm1280 = vcmp.lt.s32.totalorder %v743, 111
        %v1281 = vsel %vm1280, %v1269, %v1275
        %v1282 = vsel %vm1280, %v1271, %v1277
        %v1283 = vsel %vm1280, %v1273, %v1279
        %v1284 = vsel %vm1280, %v1263, %v1269
        %v1285 = vsel %vm1280, %v1265, %v1271
        %v1286 = vsel %vm1280, %v1267, %v1273
        %1287 = vset.pattern.permute.xlu0 8
        %1288 = vperm.xlu0 %1287, %v811
        %v1289 = vpop.permute.xlu0 %1288
        %1291 = vset.pattern.permute.xlu0 8
        %1292 = vperm.xlu0 %1291, %v812
        %v1293 = vpop.permute.xlu0 %1292
        %1295 = vset.pattern.permute.xlu0 8
        %1296 = vperm.xlu0 %1295, %v813
        %v1297 = vpop.permute.xlu0 %1296
        %v1299 = vmul.f32 %v1284, %v1289
        %v1300 = vmul.f32 %v1281, %v1289
        %v1301 = vmul.f32 %v1285, %v1293
        %v1302 = vmul.f32 %v1282, %v1293
        %v1303 = vmul.f32 %v1286, %v1297
        %v1304 = vmul.f32 %v1283, %v1297
        %v1305 = vsel %vm1010, %v1299, 0.0
        %v1306 = vsel %vm1011, %v1300, 0.0
        %v1307 = vsel %vm1010, %v1301, 0.0
        %v1308 = vsel %vm1011, %v1302, 0.0
        %v1309 = vsel %vm1010, %v1303, 0.0
        %v1310 = vsel %vm1011, %v1304, 0.0
        %v1311 = vadd.f32 %v1256, %v1305
        %v1312 = vadd.f32 %v1257, %v1306
        %v1313 = vadd.f32 %v1258, %v1307
        %v1314 = vadd.f32 %v1259, %v1308
        %v1315 = vadd.f32 %v1260, %v1309
        %v1316 = vadd.f32 %v1261, %v1310
        %v1317 = vld [vmem:[%s6] sm:$0xff]
        %v1318 = vld [vmem:[%s6 + $0x8] sm:$0xff]
        %v1319 = vld [vmem:[%s6 + $0x10] sm:$0xff]
        %1321 = vset.pattern.permute.xlu0 0
        %1322 = vperm.xlu0 %1321, %v1317
        %v1323 = vpop.permute.xlu0 %1322
        %1326 = vset.pattern.permute.xlu0 0
        %1327 = vperm.xlu0 %1326, %v1318
        %v1328 = vpop.permute.xlu0 %1327
        %1331 = vset.pattern.permute.xlu0 0
        %1332 = vperm.xlu0 %1331, %v1319
        %v1333 = vpop.permute.xlu0 %1332
        %v1335 = vadd.f32 %v1311, %v1323
        %v1336 = vadd.f32 %v1312, %v1323
        %v1337 = vadd.f32 %v1313, %v1328
        %v1338 = vadd.f32 %v1314, %v1328
        %v1339 = vadd.f32 %v1315, %v1333
        %v1340 = vadd.f32 %v1316, %v1333
        %v1341 = vmax.f32 %v1335, 0.0
        %v1342 = vmax.f32 %v1336, 0.0
        %v1343 = vmax.f32 %v1337, 0.0
        %v1344 = vmax.f32 %v1338, 0.0
        %v1345 = vmax.f32 %v1339, 0.0
        %v1346 = vmax.f32 %v1340, 0.0
        %v1347 = vmin.f32 %v1341, 6.0
        %v1348 = vmin.f32 %v1342, 6.0
        %v1349 = vmin.f32 %v1343, 6.0
        %v1350 = vmin.f32 %v1344, 6.0
        %v1351 = vmin.f32 %v1345, 6.0
        %v1352 = vmin.f32 %v1346, 6.0
        %v1353 = vld [vmem:[%s7] sm:$0xff]
        %1355 = vset.pattern.permute.xlu0 0
        %1356 = vperm.xlu0 %1355, %v1353
        %v1357 = vpop.permute.xlu0 %1356
        %v1359 = vlaneseq
        %v1360 = vshrl.u32 %v1359, 7
        %v1361 = vsub.s32 0, %v1360
        %v1362 = vrot.slane %v1347, %v1361
        %v1363 = vlaneseq
        %v1364 = vshrl.u32 %v1363, 7
        %v1365 = vsub.s32 0, %v1364
        %v1366 = vrot.slane %v1348, %v1365
        %v1367 = vmul.f32 %v1357, %v1362
        %v1368 = vmul.f32 %v1357, %v1366
        %1369 = vset.pattern.permute.xlu0 1
        %1370 = vperm.xlu0 %1369, %v1353
        %v1371 = vpop.permute.xlu0 %1370
        %v1373 = vlaneseq
        %v1374 = vshrl.u32 %v1373, 7
        %v1375 = vsub.s32 1, %v1374
        %v1376 = vrot.slane %v1347, %v1375
        %v1377 = vlaneseq
        %v1378 = vshrl.u32 %v1377, 7
        %v1379 = vsub.s32 1, %v1378
        %v1380 = vrot.slane %v1348, %v1379
        %v1381 = vmul.f32 %v1371, %v1376
        %v1382 = vmul.f32 %v1371, %v1380
        %v1383 = vadd.f32 %v1367, %v1381
        %v1384 = vadd.f32 %v1368, %v1382
        %1385 = vset.pattern.permute.xlu0 2
        %1386 = vperm.xlu0 %1385, %v1353
        %v1387 = vpop.permute.xlu0 %1386
        %v1389 = vlaneseq
        %v1390 = vshrl.u32 %v1389, 7
        %v1391 = vsub.s32 2, %v1390
        %v1392 = vrot.slane %v1347, %v1391
        %v1393 = vlaneseq
        %v1394 = vshrl.u32 %v1393, 7
        %v1395 = vsub.s32 2, %v1394
        %v1396 = vrot.slane %v1348, %v1395
        %v1397 = vmul.f32 %v1387, %v1392
        %v1398 = vmul.f32 %v1387, %v1396
        %v1399 = vadd.f32 %v1383, %v1397
        %v1400 = vadd.f32 %v1384, %v1398
        %1401 = vset.pattern.permute.xlu0 3
        %1402 = vperm.xlu0 %1401, %v1353
        %v1403 = vpop.permute.xlu0 %1402
        %v1405 = vlaneseq
        %v1406 = vshrl.u32 %v1405, 7
        %v1407 = vsub.s32 3, %v1406
        %v1408 = vrot.slane %v1347, %v1407
        %v1409 = vlaneseq
        %v1410 = vshrl.u32 %v1409, 7
        %v1411 = vsub.s32 3, %v1410
        %v1412 = vrot.slane %v1348, %v1411
        %v1413 = vmul.f32 %v1403, %v1408
        %v1414 = vmul.f32 %v1403, %v1412
        %v1415 = vadd.f32 %v1399, %v1413
        %v1416 = vadd.f32 %v1400, %v1414
        %1417 = vset.pattern.permute.xlu0 4
        %1418 = vperm.xlu0 %1417, %v1353
        %v1419 = vpop.permute.xlu0 %1418
        %v1421 = vlaneseq
        %v1422 = vshrl.u32 %v1421, 7
        %v1423 = vsub.s32 4, %v1422
        %v1424 = vrot.slane %v1347, %v1423
        %v1425 = vlaneseq
        %v1426 = vshrl.u32 %v1425, 7
        %v1427 = vsub.s32 4, %v1426
        %v1428 = vrot.slane %v1348, %v1427
        %v1429 = vmul.f32 %v1419, %v1424
        %v1430 = vmul.f32 %v1419, %v1428
        %v1431 = vadd.f32 %v1415, %v1429
        %v1432 = vadd.f32 %v1416, %v1430
        %1433 = vset.pattern.permute.xlu0 5
        %1434 = vperm.xlu0 %1433, %v1353
        %v1435 = vpop.permute.xlu0 %1434
        %v1437 = vlaneseq
        %v1438 = vshrl.u32 %v1437, 7
        %v1439 = vsub.s32 5, %v1438
        %v1440 = vrot.slane %v1347, %v1439
        %v1441 = vlaneseq
        %v1442 = vshrl.u32 %v1441, 7
        %v1443 = vsub.s32 5, %v1442
        %v1444 = vrot.slane %v1348, %v1443
        %v1445 = vmul.f32 %v1435, %v1440
        %v1446 = vmul.f32 %v1435, %v1444
        %v1447 = vadd.f32 %v1431, %v1445
        %v1448 = vadd.f32 %v1432, %v1446
        %1449 = vset.pattern.permute.xlu0 6
        %1450 = vperm.xlu0 %1449, %v1353
        %v1451 = vpop.permute.xlu0 %1450
        %v1453 = vlaneseq
        %v1454 = vshrl.u32 %v1453, 7
        %v1455 = vsub.s32 6, %v1454
        %v1456 = vrot.slane %v1347, %v1455
        %v1457 = vlaneseq
        %v1458 = vshrl.u32 %v1457, 7
        %v1459 = vsub.s32 6, %v1458
        %v1460 = vrot.slane %v1348, %v1459
        %v1461 = vmul.f32 %v1451, %v1456
        %v1462 = vmul.f32 %v1451, %v1460
        %v1463 = vadd.f32 %v1447, %v1461
        %v1464 = vadd.f32 %v1448, %v1462
        %1465 = vset.pattern.permute.xlu0 7
        %1466 = vperm.xlu0 %1465, %v1353
        %v1467 = vpop.permute.xlu0 %1466
        %v1469 = vlaneseq
        %v1470 = vshrl.u32 %v1469, 7
        %v1471 = vsub.s32 7, %v1470
        %v1472 = vrot.slane %v1347, %v1471
        %v1473 = vlaneseq
        %v1474 = vshrl.u32 %v1473, 7
        %v1475 = vsub.s32 7, %v1474
        %v1476 = vrot.slane %v1348, %v1475
        %v1477 = vmul.f32 %v1467, %v1472
        %v1478 = vmul.f32 %v1467, %v1476
        %v1479 = vadd.f32 %v1463, %v1477
        %v1480 = vadd.f32 %v1464, %v1478
        %1481 = vset.pattern.permute.xlu0 8
        %1482 = vperm.xlu0 %1481, %v1353
        %v1483 = vpop.permute.xlu0 %1482
        %v1485 = vlaneseq
        %v1486 = vshrl.u32 %v1485, 7
        %v1487 = vsub.s32 0, %v1486
        %v1488 = vrot.slane %v1349, %v1487
        %v1489 = vlaneseq
        %v1490 = vshrl.u32 %v1489, 7
        %v1491 = vsub.s32 0, %v1490
        %v1492 = vrot.slane %v1350, %v1491
        %v1493 = vmul.f32 %v1483, %v1488
        %v1494 = vmul.f32 %v1483, %v1492
        %v1495 = vadd.f32 %v1479, %v1493
        %v1496 = vadd.f32 %v1480, %v1494
        %1497 = vset.pattern.permute.xlu0 9
        %1498 = vperm.xlu0 %1497, %v1353
        %v1499 = vpop.permute.xlu0 %1498
        %v1501 = vlaneseq
        %v1502 = vshrl.u32 %v1501, 7
        %v1503 = vsub.s32 1, %v1502
        %v1504 = vrot.slane %v1349, %v1503
        %v1505 = vlaneseq
        %v1506 = vshrl.u32 %v1505, 7
        %v1507 = vsub.s32 1, %v1506
        %v1508 = vrot.slane %v1350, %v1507
        %v1509 = vmul.f32 %v1499, %v1504
        %v1510 = vmul.f32 %v1499, %v1508
        %v1511 = vadd.f32 %v1495, %v1509
        %v1512 = vadd.f32 %v1496, %v1510
        %1513 = vset.pattern.permute.xlu0 10
        %1514 = vperm.xlu0 %1513, %v1353
        %v1515 = vpop.permute.xlu0 %1514
        %v1517 = vlaneseq
        %v1518 = vshrl.u32 %v1517, 7
        %v1519 = vsub.s32 2, %v1518
        %v1520 = vrot.slane %v1349, %v1519
        %v1521 = vlaneseq
        %v1522 = vshrl.u32 %v1521, 7
        %v1523 = vsub.s32 2, %v1522
        %v1524 = vrot.slane %v1350, %v1523
        %v1525 = vmul.f32 %v1515, %v1520
        %v1526 = vmul.f32 %v1515, %v1524
        %v1527 = vadd.f32 %v1511, %v1525
        %v1528 = vadd.f32 %v1512, %v1526
        %1529 = vset.pattern.permute.xlu0 11
        %1530 = vperm.xlu0 %1529, %v1353
        %v1531 = vpop.permute.xlu0 %1530
        %v1533 = vlaneseq
        %v1534 = vshrl.u32 %v1533, 7
        %v1535 = vsub.s32 3, %v1534
        %v1536 = vrot.slane %v1349, %v1535
        %v1537 = vlaneseq
        %v1538 = vshrl.u32 %v1537, 7
        %v1539 = vsub.s32 3, %v1538
        %v1540 = vrot.slane %v1350, %v1539
        %v1541 = vmul.f32 %v1531, %v1536
        %v1542 = vmul.f32 %v1531, %v1540
        %v1543 = vadd.f32 %v1527, %v1541
        %v1544 = vadd.f32 %v1528, %v1542
        %1545 = vset.pattern.permute.xlu0 12
        %1546 = vperm.xlu0 %1545, %v1353
        %v1547 = vpop.permute.xlu0 %1546
        %v1549 = vlaneseq
        %v1550 = vshrl.u32 %v1549, 7
        %v1551 = vsub.s32 4, %v1550
        %v1552 = vrot.slane %v1349, %v1551
        %v1553 = vlaneseq
        %v1554 = vshrl.u32 %v1553, 7
        %v1555 = vsub.s32 4, %v1554
        %v1556 = vrot.slane %v1350, %v1555
        %v1557 = vmul.f32 %v1547, %v1552
        %v1558 = vmul.f32 %v1547, %v1556
        %v1559 = vadd.f32 %v1543, %v1557
        %v1560 = vadd.f32 %v1544, %v1558
        %1561 = vset.pattern.permute.xlu0 13
        %1562 = vperm.xlu0 %1561, %v1353
        %v1563 = vpop.permute.xlu0 %1562
        %v1565 = vlaneseq
        %v1566 = vshrl.u32 %v1565, 7
        %v1567 = vsub.s32 5, %v1566
        %v1568 = vrot.slane %v1349, %v1567
        %v1569 = vlaneseq
        %v1570 = vshrl.u32 %v1569, 7
        %v1571 = vsub.s32 5, %v1570
        %v1572 = vrot.slane %v1350, %v1571
        %v1573 = vmul.f32 %v1563, %v1568
        %v1574 = vmul.f32 %v1563, %v1572
        %v1575 = vadd.f32 %v1559, %v1573
        %v1576 = vadd.f32 %v1560, %v1574
        %1577 = vset.pattern.permute.xlu0 14
        %1578 = vperm.xlu0 %1577, %v1353
        %v1579 = vpop.permute.xlu0 %1578
        %v1581 = vlaneseq
        %v1582 = vshrl.u32 %v1581, 7
        %v1583 = vsub.s32 6, %v1582
        %v1584 = vrot.slane %v1349, %v1583
        %v1585 = vlaneseq
        %v1586 = vshrl.u32 %v1585, 7
        %v1587 = vsub.s32 6, %v1586
        %v1588 = vrot.slane %v1350, %v1587
        %v1589 = vmul.f32 %v1579, %v1584
        %v1590 = vmul.f32 %v1579, %v1588
        %v1591 = vadd.f32 %v1575, %v1589
        %v1592 = vadd.f32 %v1576, %v1590
        %1593 = vset.pattern.permute.xlu0 15
        %1594 = vperm.xlu0 %1593, %v1353
        %v1595 = vpop.permute.xlu0 %1594
        %v1597 = vlaneseq
        %v1598 = vshrl.u32 %v1597, 7
        %v1599 = vsub.s32 7, %v1598
        %v1600 = vrot.slane %v1349, %v1599
        %v1601 = vlaneseq
        %v1602 = vshrl.u32 %v1601, 7
        %v1603 = vsub.s32 7, %v1602
        %v1604 = vrot.slane %v1350, %v1603
        %v1605 = vmul.f32 %v1595, %v1600
        %v1606 = vmul.f32 %v1595, %v1604
        %v1607 = vadd.f32 %v1591, %v1605
        %v1608 = vadd.f32 %v1592, %v1606
        %1609 = vset.pattern.permute.xlu0 16
        %1610 = vperm.xlu0 %1609, %v1353
        %v1611 = vpop.permute.xlu0 %1610
        %v1613 = vlaneseq
        %v1614 = vshrl.u32 %v1613, 7
        %v1615 = vsub.s32 0, %v1614
        %v1616 = vrot.slane %v1351, %v1615
        %v1617 = vlaneseq
        %v1618 = vshrl.u32 %v1617, 7
        %v1619 = vsub.s32 0, %v1618
        %v1620 = vrot.slane %v1352, %v1619
        %v1621 = vmul.f32 %v1611, %v1616
        %v1622 = vmul.f32 %v1611, %v1620
        %v1623 = vadd.f32 %v1607, %v1621
        %v1624 = vadd.f32 %v1608, %v1622
        %1625 = vset.pattern.permute.xlu0 17
        %1626 = vperm.xlu0 %1625, %v1353
        %v1627 = vpop.permute.xlu0 %1626
        %v1629 = vlaneseq
        %v1630 = vshrl.u32 %v1629, 7
        %v1631 = vsub.s32 1, %v1630
        %v1632 = vrot.slane %v1351, %v1631
        %v1633 = vlaneseq
        %v1634 = vshrl.u32 %v1633, 7
        %v1635 = vsub.s32 1, %v1634
        %v1636 = vrot.slane %v1352, %v1635
        %v1637 = vmul.f32 %v1627, %v1632
        %v1638 = vmul.f32 %v1627, %v1636
        %v1639 = vadd.f32 %v1623, %v1637
        %v1640 = vadd.f32 %v1624, %v1638
        %1641 = vset.pattern.permute.xlu0 18
        %1642 = vperm.xlu0 %1641, %v1353
        %v1643 = vpop.permute.xlu0 %1642
        %v1645 = vlaneseq
        %v1646 = vshrl.u32 %v1645, 7
        %v1647 = vsub.s32 2, %v1646
        %v1648 = vrot.slane %v1351, %v1647
        %v1649 = vlaneseq
        %v1650 = vshrl.u32 %v1649, 7
        %v1651 = vsub.s32 2, %v1650
        %v1652 = vrot.slane %v1352, %v1651
        %v1653 = vmul.f32 %v1643, %v1648
        %v1654 = vmul.f32 %v1643, %v1652
        %v1655 = vadd.f32 %v1639, %v1653
        %v1656 = vadd.f32 %v1640, %v1654
        %1657 = vset.pattern.permute.xlu0 19
        %1658 = vperm.xlu0 %1657, %v1353
        %v1659 = vpop.permute.xlu0 %1658
        %v1661 = vlaneseq
        %v1662 = vshrl.u32 %v1661, 7
        %v1663 = vsub.s32 3, %v1662
        %v1664 = vrot.slane %v1351, %v1663
        %v1665 = vlaneseq
        %v1666 = vshrl.u32 %v1665, 7
        %v1667 = vsub.s32 3, %v1666
        %v1668 = vrot.slane %v1352, %v1667
        %v1669 = vmul.f32 %v1659, %v1664
        %v1670 = vmul.f32 %v1659, %v1668
        %v1671 = vadd.f32 %v1655, %v1669
        %v1672 = vadd.f32 %v1656, %v1670
        %1673 = vset.pattern.permute.xlu0 20
        %1674 = vperm.xlu0 %1673, %v1353
        %v1675 = vpop.permute.xlu0 %1674
        %v1677 = vlaneseq
        %v1678 = vshrl.u32 %v1677, 7
        %v1679 = vsub.s32 4, %v1678
        %v1680 = vrot.slane %v1351, %v1679
        %v1681 = vlaneseq
        %v1682 = vshrl.u32 %v1681, 7
        %v1683 = vsub.s32 4, %v1682
        %v1684 = vrot.slane %v1352, %v1683
        %v1685 = vmul.f32 %v1675, %v1680
        %v1686 = vmul.f32 %v1675, %v1684
        %v1687 = vadd.f32 %v1671, %v1685
        %v1688 = vadd.f32 %v1672, %v1686
        %1689 = vset.pattern.permute.xlu0 21
        %1690 = vperm.xlu0 %1689, %v1353
        %v1691 = vpop.permute.xlu0 %1690
        %v1693 = vlaneseq
        %v1694 = vshrl.u32 %v1693, 7
        %v1695 = vsub.s32 5, %v1694
        %v1696 = vrot.slane %v1351, %v1695
        %v1697 = vlaneseq
        %v1698 = vshrl.u32 %v1697, 7
        %v1699 = vsub.s32 5, %v1698
        %v1700 = vrot.slane %v1352, %v1699
        %v1701 = vmul.f32 %v1691, %v1696
        %v1702 = vmul.f32 %v1691, %v1700
        %v1703 = vadd.f32 %v1687, %v1701
        %v1704 = vadd.f32 %v1688, %v1702
        %1705 = vset.pattern.permute.xlu0 22
        %1706 = vperm.xlu0 %1705, %v1353
        %v1707 = vpop.permute.xlu0 %1706
        %v1709 = vlaneseq
        %v1710 = vshrl.u32 %v1709, 7
        %v1711 = vsub.s32 6, %v1710
        %v1712 = vrot.slane %v1351, %v1711
        %v1713 = vlaneseq
        %v1714 = vshrl.u32 %v1713, 7
        %v1715 = vsub.s32 6, %v1714
        %v1716 = vrot.slane %v1352, %v1715
        %v1717 = vmul.f32 %v1707, %v1712
        %v1718 = vmul.f32 %v1707, %v1716
        %v1719 = vadd.f32 %v1703, %v1717
        %v1720 = vadd.f32 %v1704, %v1718
        %1721 = vset.pattern.permute.xlu0 23
        %1722 = vperm.xlu0 %1721, %v1353
        %v1723 = vpop.permute.xlu0 %1722
        %v1725 = vlaneseq
        %v1726 = vshrl.u32 %v1725, 7
        %v1727 = vsub.s32 7, %v1726
        %v1728 = vrot.slane %v1351, %v1727
        %v1729 = vlaneseq
        %v1730 = vshrl.u32 %v1729, 7
        %v1731 = vsub.s32 7, %v1730
        %v1732 = vrot.slane %v1352, %v1731
        %v1733 = vmul.f32 %v1723, %v1728
        %v1734 = vmul.f32 %v1723, %v1732
        %v1735 = vadd.f32 %v1719, %v1733
        %v1736 = vadd.f32 %v1720, %v1734
        %v1737 = vld [vmem:[%s8] sm:$0xff]
        %1739 = vset.pattern.permute.xlu0 0
        %1740 = vperm.xlu0 %1739, %v1737
        %v1741 = vpop.permute.xlu0 %1740
        %v1743 = vadd.f32 %v1735, %v1741
        %v1744 = vadd.f32 %v1736, %v1741
        %1745 = vst [vmem:[%s436] sm:$0xff] %v1743
        %1746 = vst [vmem:[%s436 + $0x8] sm:$0xff] %v1744
        %s1747 = sand.u32 %s271, 1
        %s1748 = scalar_lea.sflag [#allocation3], %s1747
        %s1749 = sand.u32 %s271, 1
        %s1750 = smul.addr %s1749, 16
        %s1751 = scalar_lea.vmem [#allocation2], %s1750
        // Predicated region
        $region57: #{tpu_custom_call.1} parent=55 // pred_check
          %p1752 = pneg %p281
        $region58: #{tpu_custom_call.1} parent=55 // pred_check_branch
          %1754 = sbr.rel (%p1752) target = $region60
        $region59: #{tpu_custom_call.1} parent=55 // pred_region
          %s1755 = smul.u32 2, %s28
          %s1757 = ssub.s32 256, 256
          %1758 = vsyncadd %s1748, %s1757
          %s1759 = smul.addr %s27, 2
          %s1760 = sadd.s32 %s1755, %s1759
          %s1761 = smul.addr %s1760, 128
          %s1762 = scalar_lea.hbm %s9, %s1761
          %s1764 = sshll.u32 %s1751, 4
          %s1765 = int_to_ptr.vmem [resolvable:$true] %s1764
          %1767 = dma.vmem_to_hbm [thread:$0]  %s1765, 256, %s1762, %s1748
        $region60: #{tpu_custom_call.1} parent=55 // pred_fallthru
          _
      $region56: #{tpu_custom_call.1} parent=5 // pred_fallthru
        _
      %p1768 = scmp.le.s32.totalorder 2, %s18
      // Predicated region
      $region61: #{tpu_custom_call.1} parent=5 // pred_check
        %p1769 = pneg %p1768
      $region62: #{tpu_custom_call.1} parent=5 // pred_check_branch
        %1771 = sbr.rel (%p1769) target = $region64
      $region63: #{tpu_custom_call.1} parent=5 // pred_region
        %s1772 = ssub.s32 %s18, 2
        // Predicated region
        $region65: #{tpu_custom_call.1} parent=63 // pred_check
          %p1773 = pneg %p287
        $region66: #{tpu_custom_call.1} parent=63 // pred_check_branch
          %1775 = sbr.rel (%p1773) target = $region68
        $region67: #{tpu_custom_call.1} parent=63 // pred_region
          %s1776 = sand.u32 %s272, 1
          %s1777 = scalar_lea.sflag [#allocation3], %s1776
          %s1778 = sand.u32 %s272, 1
          %s1779 = smul.addr %s1778, 16
          %s1780 = scalar_lea.vmem [#allocation2], %s1779
          %1781 = dma.done %s1777, 256
        $region68: #{tpu_custom_call.1} parent=63 // pred_fallthru
          _
      $region64: #{tpu_custom_call.1} parent=5 // pred_fallthru
        _
    $region6: #{tpu_custom_call.1} parent=1 // loop_footer
      %s22 = sadd.s32 1, %s18
    $region7: #{tpu_custom_call.1} parent=1 // loop_footer_branch
      %17 = sbr.rel target = $region3
    $region8: #{tpu_custom_call.1} parent=1 // loop_exit
      _
    %1782 = vsyncpa [#allocation3], 1
    %s1783 = scalar_lea.sflag [#allocation3], 1
    %1784 = vsyncpa %s1783, 1

</llo_original>
